<compile_context>
chip_gen: v5e
topology: v5e:2x2
jax: 0.10.0
libtpu: 0.0.40
codegen_flags: <defaults>
</compile_context>

<pallas_src>
import jax
import jax.numpy as jnp
from jax.experimental import pallas as pl
from jax.experimental.pallas import tpu as pltpu


def pna_kernel(x_ref, adj_ref, wp_ref, bp_ref, wg1_ref, wg2_ref, wg3_ref,
               bg_ref, wpt_ref, bh_ref, o_ref):
    TB, N, F = x_ref.shape
    H = wp_ref.shape[1]

    # ---- proj_layer: Linear(F -> H) on all TB*N nodes at once ----
    xf = x_ref[...].reshape(TB * N, F).astype(jnp.float32)
    hf = jnp.dot(xf, wp_ref[...], preferred_element_type=jnp.float32) + bp_ref[...]
    h3 = hf.reshape(TB, N, H)                                 # (TB, N, H)

    # ---- neighbourhood masks ----
    m3 = (adj_ref[...] != 0.0).astype(jnp.float32)            # m3[b, j, i]: edge j -> i
    mT3 = jnp.swapaxes(m3, 1, 2)                              # mT3[b, i, j]: neighbours of i

    # degree (self loop folded analytically: +1)
    deg = jnp.sum(mT3, axis=-1, keepdims=True) + 1.0          # (TB, N, 1)
    inv_deg = pl.reciprocal(deg)                              # EUP, full precision

    # ---- mean / std aggregators: batched MXU matmuls over the whole block ----
    hh3 = h3 * h3
    ssum = jnp.einsum('bij,bjh->bih', mT3, h3,
                      preferred_element_type=jnp.float32) + h3       # self loop folded
    sqs = jnp.einsum('bij,bjh->bih', mT3, hh3,
                     preferred_element_type=jnp.float32) + hh3
    mean = ssum * inv_deg
    sqm = sqs * inv_deg
    std = jnp.sqrt(jnp.maximum(sqm - mean * mean, 0.0) + 1e-5)

    # ---- masked max / min: running extrema over source-node chunks ----
    # Self loop is the running-extremum initial value (always a neighbour after
    # adding eye). The reduction runs over the leading axis of the (ck, N, H)
    # selected block -> elementwise max across planes (no cross-lane work).
    NK = min(N, 128)
    mx_rows, mn_rows = [], []
    for b in range(TB):
        h = h3[b]                                             # (N, H)
        m = m3[b]                                             # (N, N), m[j, i]
        mx = h
        mn = h
        for s in range(0, N, NK):
            e = min(s + NK, N)
            hc = h[s:e, :]                                    # (ck, H)
            nb = m[s:e, :][:, :, None] > 0.0                  # (ck, N, 1)
            hcb = hc[:, None, :]                              # (ck, 1, H)
            mx = jnp.maximum(
                mx, jnp.max(jnp.where(nb, hcb, jnp.float32(-1e30)), axis=0))
            mn = jnp.minimum(
                mn, jnp.min(jnp.where(nb, hcb, jnp.float32(1e30)), axis=0))
        mx_rows.append(mx)
        mn_rows.append(mn)
    mx3 = jnp.stack(mx_rows, axis=0)                          # (TB, N, H)
    mn3 = jnp.stack(mn_rows, axis=0)                          # (TB, N, H)

    # ---- PNA post-linear: three K=4H matmuls, degree scalers applied to the
    #      (TB*N, H) outputs instead of materialising the (TB*N, 12H) concat ----
    aggs = jnp.concatenate([mean, mx3, mn3, std], axis=-1).reshape(TB * N, 4 * H)
    logd = jnp.log(deg + 1.0).reshape(TB * N, 1)
    inv_logd = pl.reciprocal(logd)

    g = (jnp.dot(aggs, wg1_ref[...], preferred_element_type=jnp.float32)
         + logd * jnp.dot(aggs, wg2_ref[...], preferred_element_type=jnp.float32)
         + inv_logd * jnp.dot(aggs, wg3_ref[...], preferred_element_type=jnp.float32)
         + bg_ref[...])                                       # (TB*N, H)

    # ---- pred_head: Linear(H -> 1), emitted as a dense (TB, N) tile ----
    out = jnp.sum(g.reshape(TB, N, H) * wpt_ref[...], axis=-1) + bh_ref[...]
    o_ref[...] = out.astype(o_ref.dtype)


def _pick_tb(B, N):
    """Largest batch block that divides B, keeps the per-graph max/min unroll
    and the double-buffered adjacency block bounded, and gives a legal (TB, N)
    output block (TB == B or TB % 8 == 0)."""
    best = 1
    for cand in range(1, B + 1):
        if B % cand != 0:
            continue
        if not (cand == B or cand % 8 == 0):
            continue
        if cand > 8:                                     # bound the unroll
            continue
        if cand * N * N * 4 > (4 << 20):                 # adjacency block <= 4 MiB
            continue
        best = max(best, cand)
    return best


def pna_forward(x, adj, params, *, tb=None):
    B, N, F = x.shape
    H = params["w_proj"].shape[1]
    if tb is None:
        tb = _pick_tb(B, N)
    assert B % tb == 0

    # Pre-split the PNA post-linear weight row-wise into the three scaler blocks
    # and lay the pred-head weight out lane-major (one-time host-side prep).
    w_gnn = params["w_gnn"]                              # (12H, H)
    wg1 = w_gnn[:4 * H]
    wg2 = w_gnn[4 * H:8 * H]
    wg3 = w_gnn[8 * H:]
    wpt = params["w_pred"].reshape(1, H)                 # (H, 1) -> (1, H)

    def wspec(arr):
        return pl.BlockSpec(arr.shape, lambda g: (0, 0))

    out2d = pl.pallas_call(
        pna_kernel,
        out_shape=jax.ShapeDtypeStruct((B, N), jnp.float32),
        grid_spec=pltpu.PrefetchScalarGridSpec(
            num_scalar_prefetch=0,
            grid=(B // tb,),
            in_specs=[
                pl.BlockSpec((tb, N, F), lambda g: (g, 0, 0)),
                pl.BlockSpec((tb, N, N), lambda g: (g, 0, 0)),
                wspec(params["w_proj"]),
                wspec(params["b_proj"]),
                wspec(wg1),
                wspec(wg2),
                wspec(wg3),
                wspec(params["b_gnn"]),
                wspec(wpt),
                wspec(params["b_pred"]),
            ],
            out_specs=pl.BlockSpec((tb, N), lambda g: (g, 0)),
        ),
        compiler_params=pltpu.CompilerParams(
            dimension_semantics=("parallel",),   # independent graphs
        ),
    )(x, adj, params["w_proj"], params["b_proj"], wg1, wg2, wg3,
      params["b_gnn"], wpt, params["b_pred"])

    return out2d.reshape(B, N, 1)


def pna_reference(x, adj, params):
    """Pure-JAX reference mirroring the original (adj + eye -> nonzero) semantics."""
    B, N, _ = x.shape
    h = jnp.einsum("bnf,fh->bnh", x, params["w_proj"]) + params["b_proj"]
    eye = jnp.eye(N, dtype=adj.dtype)
    mask = ((adj + eye) != 0.0).astype(jnp.float32)       # mask[b, j, i]
    mT = jnp.swapaxes(mask, 1, 2)
    deg = jnp.sum(mT, axis=-1, keepdims=True)
    mean = jnp.einsum("bij,bjh->bih", mT, h) / deg
    sqm = jnp.einsum("bij,bjh->bih", mT, h * h) / deg
    std = jnp.sqrt(jnp.maximum(sqm - mean * mean, 0.0) + 1e-5)
    nb = mT[..., None] > 0.0
    hb = h[:, None, :, :]
    mx = jnp.max(jnp.where(nb, hb, -1e30), axis=2)
    mn = jnp.min(jnp.where(nb, hb, 1e30), axis=2)
    logd = jnp.log(deg + 1.0)
    aggs = jnp.concatenate([mean, mx, mn, std], axis=-1)
    feat = jnp.concatenate([aggs, aggs * logd, aggs / logd], axis=-1)
    g = jnp.einsum("bnk,kh->bnh", feat, params["w_gnn"]) + params["b_gnn"]
    return jnp.einsum("bnh,ho->bno", g, params["w_pred"]) + params["b_pred"]


if __name__ == "__main__":
    B, N, F, H = 2, 16, 8, 32   # batch, nodes, input_size, hidden_size

    key = jax.random.PRNGKey(0)
    ks = jax.random.split(key, 6)

    x = jax.random.normal(ks[0], (B, N, F), dtype=jnp.float32)
    adj = (jax.random.uniform(ks[1], (B, N, N)) > 0.7).astype(jnp.float32)
    adj = adj * (1.0 - jnp.eye(N, dtype=jnp.float32))   # no explicit self loops (module adds eye)

    params = {
        "w_proj": jax.random.normal(ks[2], (F, H), dtype=jnp.float32) * 0.1,
        "b_proj": jnp.zeros((1, H), dtype=jnp.float32),
        "w_gnn": jax.random.normal(ks[3], (12 * H, H), dtype=jnp.float32) * 0.05,
        "b_gnn": jnp.zeros((1, H), dtype=jnp.float32),
        "w_pred": jax.random.normal(ks[4], (H, 1), dtype=jnp.float32) * 0.1,
        "b_pred": jnp.zeros((1, 1), dtype=jnp.float32),
    }

    out = pna_forward(x, adj, params)
    out = jax.block_until_ready(out)

    assert out.shape == (B, N, 1)
    assert bool(jnp.all(jnp.isfinite(out)))

    ref = pna_reference(x, adj, params)
    assert bool(jnp.allclose(out, ref, rtol=2e-2, atol=2e-3)), \
        float(jnp.max(jnp.abs(out - ref)))

    print("KERNEL_OK")
</pallas_src>

<mosaic_0001>
module attributes {stable_mosaic.version = 11 : i64} {
  func.func @pna_kernel(%arg0: i32, %arg1: memref<2x16x8xf32, #tpu.memory_space<vmem>>, %arg2: memref<2x16x16xf32, #tpu.memory_space<vmem>>, %arg3: memref<8x32xf32, #tpu.memory_space<vmem>>, %arg4: memref<1x32xf32, #tpu.memory_space<vmem>>, %arg5: memref<128x32xf32, #tpu.memory_space<vmem>>, %arg6: memref<128x32xf32, #tpu.memory_space<vmem>>, %arg7: memref<128x32xf32, #tpu.memory_space<vmem>>, %arg8: memref<1x32xf32, #tpu.memory_space<vmem>>, %arg9: memref<1x32xf32, #tpu.memory_space<vmem>>, %arg10: memref<1x1xf32, #tpu.memory_space<vmem>>, %arg11: memref<2x16xf32, #tpu.memory_space<vmem>>) attributes {dimension_semantics = [#tpu.dimension_semantics<parallel>], iteration_bounds = array<i64: 1>, scalar_prefetch = 0 : i64, scratch_operands = 0 : i64, tpu.core_type = #tpu.core_type<tc>, window_params = [{transform_indices = @transform_0, window_bounds = array<i64: 2, 16, 8>}, {transform_indices = @transform_1, window_bounds = array<i64: 2, 16, 16>}, {pipeline_mode = #tpu.pipeline_mode<synchronous>, transform_indices = @transform_2, window_bounds = array<i64: 8, 32>}, {pipeline_mode = #tpu.pipeline_mode<synchronous>, transform_indices = @transform_3, window_bounds = array<i64: 1, 32>}, {pipeline_mode = #tpu.pipeline_mode<synchronous>, transform_indices = @transform_4, window_bounds = array<i64: 128, 32>}, {pipeline_mode = #tpu.pipeline_mode<synchronous>, transform_indices = @transform_5, window_bounds = array<i64: 128, 32>}, {pipeline_mode = #tpu.pipeline_mode<synchronous>, transform_indices = @transform_6, window_bounds = array<i64: 128, 32>}, {pipeline_mode = #tpu.pipeline_mode<synchronous>, transform_indices = @transform_7, window_bounds = array<i64: 1, 32>}, {pipeline_mode = #tpu.pipeline_mode<synchronous>, transform_indices = @transform_8, window_bounds = array<i64: 1, 32>}, {pipeline_mode = #tpu.pipeline_mode<synchronous>, transform_indices = @transform_9, window_bounds = array<i64: 1, 1>}, {transform_indices = @transform_10, window_bounds = array<i64: 2, 16>}]} {
    %c0 = arith.constant 0 : index
    %c0_0 = arith.constant 0 : index
    %c0_1 = arith.constant 0 : index
    %0 = vector.load %arg1[%c0, %c0_0, %c0_1] : memref<2x16x8xf32, #tpu.memory_space<vmem>>, vector<2x16x8xf32>
    %1 = vector.shape_cast %0 : vector<2x16x8xf32> to vector<32x8xf32>
    %c0_2 = arith.constant 0 : index
    %c0_3 = arith.constant 0 : index
    %2 = vector.load %arg3[%c0_2, %c0_3] : memref<8x32xf32, #tpu.memory_space<vmem>>, vector<8x32xf32>
    %cst = arith.constant dense<0.000000e+00> : vector<32x32xf32>
    %3 = tpu.matmul %1, %2, %cst {dimension_numbers = #tpu.dot_dimension_numbers<[1], [0], [0], [1], [0, 0, 1, 1], [], []>} : vector<32x8xf32>, vector<8x32xf32>, vector<32x32xf32> -> vector<32x32xf32>
    %c0_4 = arith.constant 0 : index
    %c0_5 = arith.constant 0 : index
    %4 = vector.load %arg4[%c0_4, %c0_5] : memref<1x32xf32, #tpu.memory_space<vmem>>, vector<1x32xf32>
    %5 = vector.broadcast %4 : vector<1x32xf32> to vector<32x32xf32>
    %6 = arith.addf %3, %5 : vector<32x32xf32>
    %7 = vector.shape_cast %6 : vector<32x32xf32> to vector<2x16x32xf32>
    %c0_6 = arith.constant 0 : index
    %c0_7 = arith.constant 0 : index
    %c0_8 = arith.constant 0 : index
    %8 = vector.load %arg2[%c0_6, %c0_7, %c0_8] : memref<2x16x16xf32, #tpu.memory_space<vmem>>, vector<2x16x16xf32>
    %cst_9 = arith.constant 0.000000e+00 : f32
    %9 = vector.broadcast %cst_9 : f32 to vector<2x16x16xf32>
    %10 = arith.cmpf one, %8, %9 : vector<2x16x16xf32>
    %11 = arith.extui %10 : vector<2x16x16xi1> to vector<2x16x16xi32>
    %12 = arith.sitofp %11 : vector<2x16x16xi32> to vector<2x16x16xf32>
    %13 = tpu.transpose %12, [0, 2, 1] : vector<2x16x16xf32> -> vector<2x16x16xf32>
    %cst_10 = arith.constant dense<0.000000e+00> : vector<2x16xf32>
    %14 = vector.multi_reduction <add>, %13, %cst_10 [2] : vector<2x16x16xf32> to vector<2x16xf32>
    %15 = vector.shape_cast %14 : vector<2x16xf32> to vector<2x16x1xf32>
    %cst_11 = arith.constant 1.000000e+00 : f32
    %16 = vector.broadcast %cst_11 : f32 to vector<2x16x1xf32>
    %17 = arith.addf %15, %16 : vector<2x16x1xf32>
    %18 = tpu.reciprocal %17 : vector<2x16x1xf32> -> vector<2x16x1xf32>
    %19 = arith.mulf %7, %7 : vector<2x16x32xf32>
    "tpu.trace_start"() <{level = 10 : i32, message = "bij,bjh->bih"}> : () -> ()
    %cst_12 = arith.constant dense<0.000000e+00> : vector<2x16x32xf32>
    %20 = tpu.matmul %13, %7, %cst_12 {dimension_numbers = #tpu.dot_dimension_numbers<[2], [1], [1], [2], [0, 0, 0, 1, 1, 2], [0], [0]>} : vector<2x16x16xf32>, vector<2x16x32xf32>, vector<2x16x32xf32> -> vector<2x16x32xf32>
    "tpu.trace_stop"() : () -> ()
    %21 = arith.addf %20, %7 : vector<2x16x32xf32>
    "tpu.trace_start"() <{level = 10 : i32, message = "bij,bjh->bih"}> : () -> ()
    %cst_13 = arith.constant dense<0.000000e+00> : vector<2x16x32xf32>
    %22 = tpu.matmul %13, %19, %cst_13 {dimension_numbers = #tpu.dot_dimension_numbers<[2], [1], [1], [2], [0, 0, 0, 1, 1, 2], [0], [0]>} : vector<2x16x16xf32>, vector<2x16x32xf32>, vector<2x16x32xf32> -> vector<2x16x32xf32>
    "tpu.trace_stop"() : () -> ()
    %23 = arith.addf %22, %19 : vector<2x16x32xf32>
    %24 = vector.broadcast %18 : vector<2x16x1xf32> to vector<2x16x32xf32>
    %25 = arith.mulf %21, %24 : vector<2x16x32xf32>
    %26 = vector.broadcast %18 : vector<2x16x1xf32> to vector<2x16x32xf32>
    %27 = arith.mulf %23, %26 : vector<2x16x32xf32>
    %28 = arith.mulf %25, %25 : vector<2x16x32xf32>
    %29 = arith.subf %27, %28 : vector<2x16x32xf32>
    %cst_14 = arith.constant 0.000000e+00 : f32
    %30 = vector.broadcast %cst_14 : f32 to vector<2x16x32xf32>
    %31 = arith.maximumf %29, %30 : vector<2x16x32xf32>
    %cst_15 = arith.constant 9.99999974E-6 : f32
    %32 = vector.broadcast %cst_15 : f32 to vector<2x16x32xf32>
    %33 = arith.addf %31, %32 : vector<2x16x32xf32>
    %34 = math.sqrt %33 : vector<2x16x32xf32>
    %35 = vector.extract_strided_slice %7 {offsets = [0, 0, 0], sizes = [1, 16, 32], strides = [1, 1, 1]} : vector<2x16x32xf32> to vector<1x16x32xf32>
    %36 = vector.shape_cast %35 : vector<1x16x32xf32> to vector<16x32xf32>
    %37 = vector.extract_strided_slice %12 {offsets = [0, 0, 0], sizes = [1, 16, 16], strides = [1, 1, 1]} : vector<2x16x16xf32> to vector<1x16x16xf32>
    %38 = vector.shape_cast %37 : vector<1x16x16xf32> to vector<16x16xf32>
    %39 = vector.shape_cast %38 : vector<16x16xf32> to vector<16x16x1xf32>
    %cst_16 = arith.constant 0.000000e+00 : f32
    %40 = vector.broadcast %cst_16 : f32 to vector<16x16x1xf32>
    %41 = arith.cmpf ogt, %39, %40 : vector<16x16x1xf32>
    %42 = vector.shape_cast %36 : vector<16x32xf32> to vector<16x1x32xf32>
    %cst_17 = arith.constant -1.000000e+30 : f32
    %43 = vector.shape_cast %41 : vector<16x16x1xi1> to vector<16x16x1xi1>
    %44 = vector.broadcast %43 : vector<16x16x1xi1> to vector<16x16x32xi1>
    %45 = vector.shape_cast %42 : vector<16x1x32xf32> to vector<16x1x32xf32>
    %46 = vector.broadcast %45 : vector<16x1x32xf32> to vector<16x16x32xf32>
    %47 = vector.broadcast %cst_17 : f32 to vector<16x16x32xf32>
    %48 = arith.select %44, %46, %47 : vector<16x16x32xi1>, vector<16x16x32xf32>
    %cst_18 = arith.constant dense<0xFF800000> : vector<16x32xf32>
    %49 = vector.multi_reduction <maximumf>, %48, %cst_18 [0] : vector<16x16x32xf32> to vector<16x32xf32>
    %50 = arith.maximumf %36, %49 : vector<16x32xf32>
    %cst_19 = arith.constant 1.000000e+30 : f32
    %51 = vector.shape_cast %41 : vector<16x16x1xi1> to vector<16x16x1xi1>
    %52 = vector.broadcast %51 : vector<16x16x1xi1> to vector<16x16x32xi1>
    %53 = vector.shape_cast %42 : vector<16x1x32xf32> to vector<16x1x32xf32>
    %54 = vector.broadcast %53 : vector<16x1x32xf32> to vector<16x16x32xf32>
    %55 = vector.broadcast %cst_19 : f32 to vector<16x16x32xf32>
    %56 = arith.select %52, %54, %55 : vector<16x16x32xi1>, vector<16x16x32xf32>
    %cst_20 = arith.constant dense<0x7F800000> : vector<16x32xf32>
    %57 = vector.multi_reduction <minimumf>, %56, %cst_20 [0] : vector<16x16x32xf32> to vector<16x32xf32>
    %58 = arith.minimumf %36, %57 : vector<16x32xf32>
    %59 = vector.extract_strided_slice %7 {offsets = [1, 0, 0], sizes = [1, 16, 32], strides = [1, 1, 1]} : vector<2x16x32xf32> to vector<1x16x32xf32>
    %60 = vector.shape_cast %59 : vector<1x16x32xf32> to vector<16x32xf32>
    %61 = vector.extract_strided_slice %12 {offsets = [1, 0, 0], sizes = [1, 16, 16], strides = [1, 1, 1]} : vector<2x16x16xf32> to vector<1x16x16xf32>
    %62 = vector.shape_cast %61 : vector<1x16x16xf32> to vector<16x16xf32>
    %63 = vector.shape_cast %62 : vector<16x16xf32> to vector<16x16x1xf32>
    %cst_21 = arith.constant 0.000000e+00 : f32
    %64 = vector.broadcast %cst_21 : f32 to vector<16x16x1xf32>
    %65 = arith.cmpf ogt, %63, %64 : vector<16x16x1xf32>
    %66 = vector.shape_cast %60 : vector<16x32xf32> to vector<16x1x32xf32>
    %cst_22 = arith.constant -1.000000e+30 : f32
    %67 = vector.shape_cast %65 : vector<16x16x1xi1> to vector<16x16x1xi1>
    %68 = vector.broadcast %67 : vector<16x16x1xi1> to vector<16x16x32xi1>
    %69 = vector.shape_cast %66 : vector<16x1x32xf32> to vector<16x1x32xf32>
    %70 = vector.broadcast %69 : vector<16x1x32xf32> to vector<16x16x32xf32>
    %71 = vector.broadcast %cst_22 : f32 to vector<16x16x32xf32>
    %72 = arith.select %68, %70, %71 : vector<16x16x32xi1>, vector<16x16x32xf32>
    %cst_23 = arith.constant dense<0xFF800000> : vector<16x32xf32>
    %73 = vector.multi_reduction <maximumf>, %72, %cst_23 [0] : vector<16x16x32xf32> to vector<16x32xf32>
    %74 = arith.maximumf %60, %73 : vector<16x32xf32>
    %cst_24 = arith.constant 1.000000e+30 : f32
    %75 = vector.shape_cast %65 : vector<16x16x1xi1> to vector<16x16x1xi1>
    %76 = vector.broadcast %75 : vector<16x16x1xi1> to vector<16x16x32xi1>
    %77 = vector.shape_cast %66 : vector<16x1x32xf32> to vector<16x1x32xf32>
    %78 = vector.broadcast %77 : vector<16x1x32xf32> to vector<16x16x32xf32>
    %79 = vector.broadcast %cst_24 : f32 to vector<16x16x32xf32>
    %80 = arith.select %76, %78, %79 : vector<16x16x32xi1>, vector<16x16x32xf32>
    %cst_25 = arith.constant dense<0x7F800000> : vector<16x32xf32>
    %81 = vector.multi_reduction <minimumf>, %80, %cst_25 [0] : vector<16x16x32xf32> to vector<16x32xf32>
    %82 = arith.minimumf %60, %81 : vector<16x32xf32>
    %83 = vector.shape_cast %50 : vector<16x32xf32> to vector<1x16x32xf32>
    %84 = vector.shape_cast %74 : vector<16x32xf32> to vector<1x16x32xf32>
    %85 = tpu.concatenate %83, %84 in 0 : vector<1x16x32xf32>, vector<1x16x32xf32> -> vector<2x16x32xf32>
    %86 = vector.shape_cast %58 : vector<16x32xf32> to vector<1x16x32xf32>
    %87 = vector.shape_cast %82 : vector<16x32xf32> to vector<1x16x32xf32>
    %88 = tpu.concatenate %86, %87 in 0 : vector<1x16x32xf32>, vector<1x16x32xf32> -> vector<2x16x32xf32>
    %89 = tpu.concatenate %25, %85, %88, %34 in 2 : vector<2x16x32xf32>, vector<2x16x32xf32>, vector<2x16x32xf32>, vector<2x16x32xf32> -> vector<2x16x128xf32>
    %90 = vector.shape_cast %89 : vector<2x16x128xf32> to vector<32x128xf32>
    %cst_26 = arith.constant 1.000000e+00 : f32
    %91 = vector.broadcast %cst_26 : f32 to vector<2x16x1xf32>
    %92 = arith.addf %17, %91 : vector<2x16x1xf32>
    %93 = math.log %92 : vector<2x16x1xf32>
    %94 = vector.shape_cast %93 : vector<2x16x1xf32> to vector<32x1xf32>
    %95 = tpu.reciprocal %94 : vector<32x1xf32> -> vector<32x1xf32>
    %c0_27 = arith.constant 0 : index
    %c0_28 = arith.constant 0 : index
    %96 = vector.load %arg5[%c0_27, %c0_28] : memref<128x32xf32, #tpu.memory_space<vmem>>, vector<128x32xf32>
    %cst_29 = arith.constant dense<0.000000e+00> : vector<32x32xf32>
    %97 = tpu.matmul %90, %96, %cst_29 {dimension_numbers = #tpu.dot_dimension_numbers<[1], [0], [0], [1], [0, 0, 1, 1], [], []>} : vector<32x128xf32>, vector<128x32xf32>, vector<32x32xf32> -> vector<32x32xf32>
    %c0_30 = arith.constant 0 : index
    %c0_31 = arith.constant 0 : index
    %98 = vector.load %arg6[%c0_30, %c0_31] : memref<128x32xf32, #tpu.memory_space<vmem>>, vector<128x32xf32>
    %cst_32 = arith.constant dense<0.000000e+00> : vector<32x32xf32>
    %99 = tpu.matmul %90, %98, %cst_32 {dimension_numbers = #tpu.dot_dimension_numbers<[1], [0], [0], [1], [0, 0, 1, 1], [], []>} : vector<32x128xf32>, vector<128x32xf32>, vector<32x32xf32> -> vector<32x32xf32>
    %100 = vector.broadcast %94 : vector<32x1xf32> to vector<32x32xf32>
    %101 = arith.mulf %100, %99 : vector<32x32xf32>
    %102 = arith.addf %97, %101 : vector<32x32xf32>
    %c0_33 = arith.constant 0 : index
    %c0_34 = arith.constant 0 : index
    %103 = vector.load %arg7[%c0_33, %c0_34] : memref<128x32xf32, #tpu.memory_space<vmem>>, vector<128x32xf32>
    %cst_35 = arith.constant dense<0.000000e+00> : vector<32x32xf32>
    %104 = tpu.matmul %90, %103, %cst_35 {dimension_numbers = #tpu.dot_dimension_numbers<[1], [0], [0], [1], [0, 0, 1, 1], [], []>} : vector<32x128xf32>, vector<128x32xf32>, vector<32x32xf32> -> vector<32x32xf32>
    %105 = vector.broadcast %95 : vector<32x1xf32> to vector<32x32xf32>
    %106 = arith.mulf %105, %104 : vector<32x32xf32>
    %107 = arith.addf %102, %106 : vector<32x32xf32>
    %c0_36 = arith.constant 0 : index
    %c0_37 = arith.constant 0 : index
    %108 = vector.load %arg8[%c0_36, %c0_37] : memref<1x32xf32, #tpu.memory_space<vmem>>, vector<1x32xf32>
    %109 = vector.broadcast %108 : vector<1x32xf32> to vector<32x32xf32>
    %110 = arith.addf %107, %109 : vector<32x32xf32>
    %111 = vector.shape_cast %110 : vector<32x32xf32> to vector<2x16x32xf32>
    %c0_38 = arith.constant 0 : index
    %c0_39 = arith.constant 0 : index
    %112 = vector.load %arg9[%c0_38, %c0_39] : memref<1x32xf32, #tpu.memory_space<vmem>>, vector<1x32xf32>
    %113 = vector.shape_cast %112 : vector<1x32xf32> to vector<1x1x32xf32>
    %114 = vector.broadcast %113 : vector<1x1x32xf32> to vector<2x16x32xf32>
    %115 = arith.mulf %111, %114 : vector<2x16x32xf32>
    %cst_40 = arith.constant dense<0.000000e+00> : vector<2x16xf32>
    %116 = vector.multi_reduction <add>, %115, %cst_40 [2] : vector<2x16x32xf32> to vector<2x16xf32>
    %c0_41 = arith.constant 0 : index
    %c0_42 = arith.constant 0 : index
    %117 = vector.load %arg10[%c0_41, %c0_42] : memref<1x1xf32, #tpu.memory_space<vmem>>, vector<1x1xf32>
    %118 = vector.broadcast %117 : vector<1x1xf32> to vector<2x16xf32>
    %119 = arith.addf %116, %118 : vector<2x16xf32>
    %c0_43 = arith.constant 0 : index
    %c0_44 = arith.constant 0 : index
    %120 = vector.load %arg11[%c0_43, %c0_44] : memref<2x16xf32, #tpu.memory_space<vmem>>, vector<2x16xf32>
    tpu.vector_store %arg11[%c0_43, %c0_44], %119 {strides = array<i32>} : memref<2x16xf32, #tpu.memory_space<vmem>>, vector<2x16xf32>,
    return
  }
  func.func @transform_0(%arg0: i32) -> (i32, i32, i32) {
    %c0_i32 = arith.constant 0 : i32
    %c0_i32_0 = arith.constant 0 : i32
    %c0_i32_1 = arith.constant 0 : i32
    return %arg0, %c0_i32, %c0_i32_0 : i32, i32, i32
  }
  func.func @transform_1(%arg0: i32) -> (i32, i32, i32) {
    %c0_i32 = arith.constant 0 : i32
    %c0_i32_0 = arith.constant 0 : i32
    %c0_i32_1 = arith.constant 0 : i32
    return %arg0, %c0_i32, %c0_i32_0 : i32, i32, i32
  }
  func.func @transform_2(%arg0: i32) -> (i32, i32) {
    %c0_i32 = arith.constant 0 : i32
    %c0_i32_0 = arith.constant 0 : i32
    %c0_i32_1 = arith.constant 0 : i32
    return %c0_i32, %c0_i32_0 : i32, i32
  }
  func.func @transform_3(%arg0: i32) -> (i32, i32) {
    %c0_i32 = arith.constant 0 : i32
    %c0_i32_0 = arith.constant 0 : i32
    %c0_i32_1 = arith.constant 0 : i32
    return %c0_i32, %c0_i32_0 : i32, i32
  }
  func.func @transform_4(%arg0: i32) -> (i32, i32) {
    %c0_i32 = arith.constant 0 : i32
    %c0_i32_0 = arith.constant 0 : i32
    %c0_i32_1 = arith.constant 0 : i32
    return %c0_i32, %c0_i32_0 : i32, i32
  }
  func.func @transform_5(%arg0: i32) -> (i32, i32) {
    %c0_i32 = arith.constant 0 : i32
    %c0_i32_0 = arith.constant 0 : i32
    %c0_i32_1 = arith.constant 0 : i32
    return %c0_i32, %c0_i32_0 : i32, i32
  }
  func.func @transform_6(%arg0: i32) -> (i32, i32) {
    %c0_i32 = arith.constant 0 : i32
    %c0_i32_0 = arith.constant 0 : i32
    %c0_i32_1 = arith.constant 0 : i32
    return %c0_i32, %c0_i32_0 : i32, i32
  }
  func.func @transform_7(%arg0: i32) -> (i32, i32) {
    %c0_i32 = arith.constant 0 : i32
    %c0_i32_0 = arith.constant 0 : i32
    %c0_i32_1 = arith.constant 0 : i32
    return %c0_i32, %c0_i32_0 : i32, i32
  }
  func.func @transform_8(%arg0: i32) -> (i32, i32) {
    %c0_i32 = arith.constant 0 : i32
    %c0_i32_0 = arith.constant 0 : i32
    %c0_i32_1 = arith.constant 0 : i32
    return %c0_i32, %c0_i32_0 : i32, i32
  }
  func.func @transform_9(%arg0: i32) -> (i32, i32) {
    %c0_i32 = arith.constant 0 : i32
    %c0_i32_0 = arith.constant 0 : i32
    %c0_i32_1 = arith.constant 0 : i32
    return %c0_i32, %c0_i32_0 : i32, i32
  }
  func.func @transform_10(%arg0: i32) -> (i32, i32) {
    %c0_i32 = arith.constant 0 : i32
    %c0_i32_0 = arith.constant 0 : i32
    return %arg0, %c0_i32 : i32, i32
  }
}

</mosaic_0001>

<llo_original>
// kernel: tpu_custom_call.1
$region0: #{tpu_custom_call.1}
  #allocation0 [shape = 'u32[]', space=smem, size = 0x4, offset = 0x4, fixed_abs, tag = 'smem constant byte address 0x4 - core index']
  #allocation1 [shape = 'u32[72,128]{1,0:T(1,128)}', space=vmem, size = 0x9000, scoped, tag = 'internal scratch']
  #allocation2 [shape = 'f32[1,1]{1,0:T(1,128)S(1)}', space=vmem, size = 0x200, scoped, tag = 'scoped memory for tpu_custom_call.1']
  %s0 = inlined_call_operand.vmem [shape: f32[2,16,8], index: 0, kind: input, shape index: {}]
  %s1 = inlined_call_operand.vmem [shape: f32[2,16,16], index: 1, kind: input, shape index: {}]
  %s2 = inlined_call_operand.vmem [shape: f32[8,32], index: 2, kind: input, shape index: {}]
  %s3 = inlined_call_operand.vmem [shape: f32[1,32], index: 3, kind: input, shape index: {}]
  %s4 = inlined_call_operand.vmem [shape: f32[128,32], index: 4, kind: input, shape index: {}]
  %s5 = inlined_call_operand.vmem [shape: f32[128,32], index: 5, kind: input, shape index: {}]
  %s6 = inlined_call_operand.vmem [shape: f32[128,32], index: 6, kind: input, shape index: {}]
  %s7 = inlined_call_operand.vmem [shape: f32[1,32], index: 7, kind: input, shape index: {}]
  %s8 = inlined_call_operand.vmem [shape: f32[1,32], index: 8, kind: input, shape index: {}]
  %s9 = inlined_call_operand.<no memory space> [shape: f32[1,1], index: 9, kind: input, shape index: {}]
  %s10 = inlined_call_operand.hbm [shape: f32[2,16], index: 10, kind: output, shape index: {}]
  %s11 = sld [smem:[#allocation0]]
  $region50: #{tpu_custom_call.1} parent=0
    _
  %s13 = ssub.s32 1, %s11
  %s14 = scalar_select 0, %s13, %s11
  %v15 = vstv %s9
  %16 = vst [vmem:[#allocation2] sm:$0x1] %v15
  $region1: #{tpu_custom_call.1} parent=0
    #allocation3 [shape = 'u8[1024]{0}', space=vmem, size = 0x400, scoped, tag = 'output window, operand 0, single buffered']
    #allocation4 [shape = 's32[1]{0}', space=sflag, size = 0x4, scoped, tag = 'scoped memory for tpu_custom_call.1']
    %17 = vsyncpa [#allocation4], 0
    // Predicated region
    $region2: #{tpu_custom_call.1} parent=1 // pred_check
      _
    $region3: #{tpu_custom_call.1} parent=1 // pred_check_branch
      %19 = sbr.rel (0) target = $region5
    $region4: #{tpu_custom_call.1} parent=1 // pred_region
      _
    $region5: #{tpu_custom_call.1} parent=1 // pred_fallthru
      _
    // Predicated region
    $region6: #{tpu_custom_call.1} parent=1 // pred_check
      _
    $region7: #{tpu_custom_call.1} parent=1 // pred_check_branch
      %21 = sbr.rel (0) target = $region9
    $region8: #{tpu_custom_call.1} parent=1 // pred_region
      _
    $region9: #{tpu_custom_call.1} parent=1 // pred_fallthru
      _
    // Predicated region
    $region10: #{tpu_custom_call.1} parent=1 // pred_check
      _
    $region11: #{tpu_custom_call.1} parent=1 // pred_check_branch
      %23 = sbr.rel (0) target = $region13
    $region12: #{tpu_custom_call.1} parent=1 // pred_region
      _
    $region13: #{tpu_custom_call.1} parent=1 // pred_fallthru
      _
    // Predicated region
    $region14: #{tpu_custom_call.1} parent=1 // pred_check
      _
    $region15: #{tpu_custom_call.1} parent=1 // pred_check_branch
      %25 = sbr.rel (0) target = $region17
    $region16: #{tpu_custom_call.1} parent=1 // pred_region
      _
    $region17: #{tpu_custom_call.1} parent=1 // pred_fallthru
      _
    // Predicated region
    $region18: #{tpu_custom_call.1} parent=1 // pred_check
      _
    $region19: #{tpu_custom_call.1} parent=1 // pred_check_branch
      %27 = sbr.rel (0) target = $region21
    $region20: #{tpu_custom_call.1} parent=1 // pred_region
      _
    $region21: #{tpu_custom_call.1} parent=1 // pred_fallthru
      _
    // Predicated region
    $region22: #{tpu_custom_call.1} parent=1 // pred_check
      _
    $region23: #{tpu_custom_call.1} parent=1 // pred_check_branch
      %29 = sbr.rel (0) target = $region25
    $region24: #{tpu_custom_call.1} parent=1 // pred_region
      _
    $region25: #{tpu_custom_call.1} parent=1 // pred_fallthru
      _
    // Predicated region
    $region26: #{tpu_custom_call.1} parent=1 // pred_check
      _
    $region27: #{tpu_custom_call.1} parent=1 // pred_check_branch
      %31 = sbr.rel (0) target = $region29
    $region28: #{tpu_custom_call.1} parent=1 // pred_region
      _
    $region29: #{tpu_custom_call.1} parent=1 // pred_fallthru
      _
    // Predicated region
    $region30: #{tpu_custom_call.1} parent=1 // pred_check
      _
    $region31: #{tpu_custom_call.1} parent=1 // pred_check_branch
      %33 = sbr.rel (0) target = $region33
    $region32: #{tpu_custom_call.1} parent=1 // pred_region
      _
    $region33: #{tpu_custom_call.1} parent=1 // pred_fallthru
      _
    // Predicated region
    $region34: #{tpu_custom_call.1} parent=1 // pred_check
      _
    $region35: #{tpu_custom_call.1} parent=1 // pred_check_branch
      %35 = sbr.rel (0) target = $region37
    $region36: #{tpu_custom_call.1} parent=1 // pred_region
      _
    $region37: #{tpu_custom_call.1} parent=1 // pred_fallthru
      _
    // Predicated region
    $region38: #{tpu_custom_call.1} parent=1 // pred_check
      _
    $region39: #{tpu_custom_call.1} parent=1 // pred_check_branch
      %37 = sbr.rel (0) target = $region41
    $region40: #{tpu_custom_call.1} parent=1 // pred_region
      _
    $region41: #{tpu_custom_call.1} parent=1 // pred_fallthru
      _
    %v38 = vld [vmem:[%s0] sm:$0xff]
    %v39 = vld [vmem:[%s0 + $0x8] sm:$0xff]
    %v40 = vld [vmem:[%s0 + $0x10] sm:$0xff]
    %v41 = vld [vmem:[%s0 + $0x18] sm:$0xff]
    %v42 = vld [vmem:[%s2] sm:$0xff]
    %v43 = vld [vmem:[%s3] sm:$0x1]
    %v45 = vperm.slane %v43, 0
    %vm47 = vcmask 64512
    %v49 = vsel %vm47, %v38, 0
    %v52 = vsel %vm47, %v39, 0
    %v55 = vsel %vm47, %v40, 0
    %v58 = vsel %vm47, %v41, 0
    %60 = vmatpush.msra.mxu0 0.0
    %61 = vmatpush.msra.mxu0 0.0
    %62 = vmatpush.msra.mxu0 0.0
    %63 = vmatpush.msra.mxu0 0.0
    %64 = vmatpush.msra.mxu0 0.0
    %65 = vmatpush.msra.mxu0 0.0
    %66 = vmatpush.msra.mxu0 0.0
    %67 = vmatpush.msra.mxu0 0.0
    %68 = vmatpush.msra.mxu0 0.0
    %69 = vmatpush.msra.mxu0 0.0
    %70 = vmatpush.msra.mxu0 0.0
    %71 = vmatpush.msra.mxu0 0.0
    %72 = vmatpush.msra.mxu0 0.0
    %73 = vmatpush.msra.mxu0 0.0
    %74 = vmatpush.msra.mxu0 0.0
    %75 = vmatpush.msra.mxu0 %v42
    %76 = vmatmul.f32.gmra.mxu0 %v49
    %v77 = vpop.f32.mrf.mxu0
    %v78 = vadd.f32 %v45, %v77
    %79 = vmatmul.f32.gmra.mxu0 %v52
    %v80 = vpop.f32.mrf.mxu0
    %v81 = vadd.f32 %v45, %v80
    %82 = vmatmul.f32.gmra.mxu0 %v55
    %v83 = vpop.f32.mrf.mxu0
    %v84 = vadd.f32 %v45, %v83
    %85 = vmatmul.f32.gmra.mxu0 %v58
    %v86 = vpop.f32.mrf.mxu0
    %v87 = vadd.f32 %v45, %v86
    %88 = vdwg.mxu0
    %v89 = vld [vmem:[%s1] sm:$0xff]
    %v90 = vld [vmem:[%s1 + $0x8] sm:$0xff]
    %v91 = vld [vmem:[%s1 + $0x10] sm:$0xff]
    %v92 = vld [vmem:[%s1 + $0x18] sm:$0xff]
    %vm93 = vcmp.ne.f32.partialorder %v89, 0.0
    %vm94 = vcmp.ne.f32.partialorder %v90, 0.0
    %vm95 = vcmp.ne.f32.partialorder %v91, 0.0
    %vm96 = vcmp.ne.f32.partialorder %v92, 0.0
    %v97 = vsel %vm93, 1, 0
    %v98 = vsel %vm94, 1, 0
    %v99 = vsel %vm95, 1, 0
    %v100 = vsel %vm96, 1, 0
    %v101 = vcvt.s32.f32 %v97
    %v102 = vcvt.s32.f32 %v98
    %v103 = vcvt.s32.f32 %v99
    %v104 = vcvt.s32.f32 %v100
    %105 = vxpose.xlu0.b32.start [1/16] %v101, 128
    %106 = vxpose.xlu0.b32.cont [2/16] %v102, 128
    %107 = vxpose.xlu0.b32.cont [3/16] 0.0, 128
    %108 = vxpose.xlu0.b32.cont [4/16] 0.0, 128
    %109 = vxpose.xlu0.b32.cont [5/16] 0.0, 128
    %110 = vxpose.xlu0.b32.cont [6/16] 0.0, 128
    %111 = vxpose.xlu0.b32.cont [7/16] 0.0, 128
    %112 = vxpose.xlu0.b32.cont [8/16] 0.0, 128
    %113 = vxpose.xlu0.b32.cont [9/16] 0.0, 128
    %114 = vxpose.xlu0.b32.cont [10/16] 0.0, 128
    %115 = vxpose.xlu0.b32.cont [11/16] 0.0, 128
    %116 = vxpose.xlu0.b32.cont [12/16] 0.0, 128
    %117 = vxpose.xlu0.b32.cont [13/16] 0.0, 128
    %118 = vxpose.xlu0.b32.cont [14/16] 0.0, 128
    %119 = vxpose.xlu0.b32.cont [15/16] 0.0, 128
    %120 = vxpose.xlu0.b32.end [16/16] 0.0, 128
    %v121 = vpop.trf.xlu0
    %v122 = vpop.trf.xlu0
    %v123 = vpop.trf.xlu0
    %v124 = vpop.trf.xlu0
    %v125 = vpop.trf.xlu0
    %v126 = vpop.trf.xlu0
    %v127 = vpop.trf.xlu0
    %v128 = vpop.trf.xlu0
    %v129 = vpop.trf.xlu0
    %v130 = vpop.trf.xlu0
    %v131 = vpop.trf.xlu0
    %v132 = vpop.trf.xlu0
    %v133 = vpop.trf.xlu0
    %v134 = vpop.trf.xlu0
    %v135 = vpop.trf.xlu0
    %v136 = vpop.trf.xlu0
    %137 = vxpose.xlu0.b32.start [1/16] %v103, 128
    %138 = vxpose.xlu0.b32.cont [2/16] %v104, 128
    %139 = vxpose.xlu0.b32.cont [3/16] 0.0, 128
    %140 = vxpose.xlu0.b32.cont [4/16] 0.0, 128
    %141 = vxpose.xlu0.b32.cont [5/16] 0.0, 128
    %142 = vxpose.xlu0.b32.cont [6/16] 0.0, 128
    %143 = vxpose.xlu0.b32.cont [7/16] 0.0, 128
    %144 = vxpose.xlu0.b32.cont [8/16] 0.0, 128
    %145 = vxpose.xlu0.b32.cont [9/16] 0.0, 128
    %146 = vxpose.xlu0.b32.cont [10/16] 0.0, 128
    %147 = vxpose.xlu0.b32.cont [11/16] 0.0, 128
    %148 = vxpose.xlu0.b32.cont [12/16] 0.0, 128
    %149 = vxpose.xlu0.b32.cont [13/16] 0.0, 128
    %150 = vxpose.xlu0.b32.cont [14/16] 0.0, 128
    %151 = vxpose.xlu0.b32.cont [15/16] 0.0, 128
    %152 = vxpose.xlu0.b32.end [16/16] 0.0, 128
    %v153 = vpop.trf.xlu0
    %v154 = vpop.trf.xlu0
    %v155 = vpop.trf.xlu0
    %v156 = vpop.trf.xlu0
    %v157 = vpop.trf.xlu0
    %v158 = vpop.trf.xlu0
    %v159 = vpop.trf.xlu0
    %v160 = vpop.trf.xlu0
    %v161 = vpop.trf.xlu0
    %v162 = vpop.trf.xlu0
    %v163 = vpop.trf.xlu0
    %v164 = vpop.trf.xlu0
    %v165 = vpop.trf.xlu0
    %v166 = vpop.trf.xlu0
    %v167 = vpop.trf.xlu0
    %v168 = vpop.trf.xlu0
    %vm169 = vcmask 130048
    %v170 = vsel %vm169, %v121, 0.0
    %171 = vadd.xlane.f32.xlu0 %v170
    %v172 = vpop.xlane.xlu0 %171
    %v173 = vsel %vm169, %v122, 0.0
    %174 = vadd.xlane.f32.xlu0 %v173
    %v175 = vpop.xlane.xlu0 %174
    %v176 = vsel %vm169, %v153, 0.0
    %177 = vadd.xlane.f32.xlu0 %v176
    %v178 = vpop.xlane.xlu0 %177
    %v179 = vsel %vm169, %v154, 0.0
    %180 = vadd.xlane.f32.xlu0 %v179
    %v181 = vpop.xlane.xlu0 %180
    %v182 = vadd.f32 %v172, 1.0
    %v183 = vadd.f32 %v175, 1.0
    %v184 = vadd.f32 %v178, 1.0
    %v185 = vadd.f32 %v181, 1.0
    %v186 = vrcp.pop %v182
    %v187 = vmul.f32 %v182, %v186
    %v188 = vsub.f32 1.0, %v187
    %v189 = vmul.f32 %v186, %v188
    %v190 = vadd.f32 %v186, %v189
    %vm191 = vweird.f32 %v182
    %vm192 = vweird.f32 %v186
    %vm193 = vmor %vm191, %vm192
    %v194 = vsel %vm193, %v186, %v190
    %v195 = vand.u32 2147483647, %v182
    %vm196 = vcmp.eq.f32.partialorder %v195, 8.507059e+37
    %v197 = vand.u32 %v182, 2147483648
    %v198 = vor.u32 1.1754944e-38, %v197
    %v199 = vsel %vm196, %v198, %v194
    %v200 = vrcp.pop %v183
    %v201 = vmul.f32 %v183, %v200
    %v202 = vsub.f32 1.0, %v201
    %v203 = vmul.f32 %v200, %v202
    %v204 = vadd.f32 %v200, %v203
    %vm205 = vweird.f32 %v183
    %vm206 = vweird.f32 %v200
    %vm207 = vmor %vm205, %vm206
    %v208 = vsel %vm207, %v200, %v204
    %v209 = vand.u32 2147483647, %v183
    %vm210 = vcmp.eq.f32.partialorder %v209, 8.507059e+37
    %v211 = vand.u32 %v183, 2147483648
    %v212 = vor.u32 1.1754944e-38, %v211
    %v213 = vsel %vm210, %v212, %v208
    %v214 = vrcp.pop %v184
    %v215 = vmul.f32 %v184, %v214
    %v216 = vsub.f32 1.0, %v215
    %v217 = vmul.f32 %v214, %v216
    %v218 = vadd.f32 %v214, %v217
    %vm219 = vweird.f32 %v184
    %vm220 = vweird.f32 %v214
    %vm221 = vmor %vm219, %vm220
    %v222 = vsel %vm221, %v214, %v218
    %v223 = vand.u32 2147483647, %v184
    %vm224 = vcmp.eq.f32.partialorder %v223, 8.507059e+37
    %v225 = vand.u32 %v184, 2147483648
    %v226 = vor.u32 1.1754944e-38, %v225
    %v227 = vsel %vm224, %v226, %v222
    %v228 = vrcp.pop %v185
    %v229 = vmul.f32 %v185, %v228
    %v230 = vsub.f32 1.0, %v229
    %v231 = vmul.f32 %v228, %v230
    %v232 = vadd.f32 %v228, %v231
    %vm233 = vweird.f32 %v185
    %vm234 = vweird.f32 %v228
    %vm235 = vmor %vm233, %vm234
    %v236 = vsel %vm235, %v228, %v232
    %v237 = vand.u32 2147483647, %v185
    %vm238 = vcmp.eq.f32.partialorder %v237, 8.507059e+37
    %v239 = vand.u32 %v185, 2147483648
    %v240 = vor.u32 1.1754944e-38, %v239
    %v241 = vsel %vm238, %v240, %v236
    %v242 = vmul.f32 %v78, %v78
    %v243 = vmul.f32 %v81, %v81
    %v244 = vmul.f32 %v84, %v84
    %v245 = vmul.f32 %v87, %v87
    %v247 = vsel %vm169, %v121, 0
    %v250 = vsel %vm169, %v122, 0
    %252 = vmatpush.msra.mxu0 0.0
    %253 = vmatpush.msra.mxu0 0.0
    %254 = vmatpush.msra.mxu0 0.0
    %255 = vmatpush.msra.mxu0 0.0
    %256 = vmatpush.msra.mxu0 0.0
    %257 = vmatpush.msra.mxu0 0.0
    %258 = vmatpush.msra.mxu0 0.0
    %259 = vmatpush.msra.mxu0 0.0
    %260 = vmatpush.msra.mxu0 0.0
    %261 = vmatpush.msra.mxu0 0.0
    %262 = vmatpush.msra.mxu0 0.0
    %263 = vmatpush.msra.mxu0 0.0
    %264 = vmatpush.msra.mxu0 0.0
    %265 = vmatpush.msra.mxu0 0.0
    %266 = vmatpush.msra.mxu0 %v81
    %267 = vmatpush.msra.mxu0 %v78
    %268 = vmatmul.f32.gmra.mxu0 %v247
    %v269 = vpop.f32.mrf.mxu0
    %v270 = vadd.f32 %v78, %v269
    %271 = vmatmul.f32.gmra.mxu0 %v250
    %v272 = vpop.f32.mrf.mxu0
    %v273 = vadd.f32 %v81, %v272
    %274 = vdwg.mxu0
    %v276 = vsel %vm169, %v153, 0
    %v279 = vsel %vm169, %v154, 0
    %281 = vmatpush.msra.mxu0 0.0
    %282 = vmatpush.msra.mxu0 0.0
    %283 = vmatpush.msra.mxu0 0.0
    %284 = vmatpush.msra.mxu0 0.0
    %285 = vmatpush.msra.mxu0 0.0
    %286 = vmatpush.msra.mxu0 0.0
    %287 = vmatpush.msra.mxu0 0.0
    %288 = vmatpush.msra.mxu0 0.0
    %289 = vmatpush.msra.mxu0 0.0
    %290 = vmatpush.msra.mxu0 0.0
    %291 = vmatpush.msra.mxu0 0.0
    %292 = vmatpush.msra.mxu0 0.0
    %293 = vmatpush.msra.mxu0 0.0
    %294 = vmatpush.msra.mxu0 0.0
    %295 = vmatpush.msra.mxu0 %v87
    %296 = vmatpush.msra.mxu0 %v84
    %297 = vmatmul.f32.gmra.mxu0 %v276
    %v298 = vpop.f32.mrf.mxu0
    %v299 = vadd.f32 %v84, %v298
    %300 = vmatmul.f32.gmra.mxu0 %v279
    %v301 = vpop.f32.mrf.mxu0
    %v302 = vadd.f32 %v87, %v301
    %303 = vdwg.mxu0
    %304 = vmatpush.msra.mxu0 0.0
    %305 = vmatpush.msra.mxu0 0.0
    %306 = vmatpush.msra.mxu0 0.0
    %307 = vmatpush.msra.mxu0 0.0
    %308 = vmatpush.msra.mxu0 0.0
    %309 = vmatpush.msra.mxu0 0.0
    %310 = vmatpush.msra.mxu0 0.0
    %311 = vmatpush.msra.mxu0 0.0
    %312 = vmatpush.msra.mxu0 0.0
    %313 = vmatpush.msra.mxu0 0.0
    %314 = vmatpush.msra.mxu0 0.0
    %315 = vmatpush.msra.mxu0 0.0
    %316 = vmatpush.msra.mxu0 0.0
    %317 = vmatpush.msra.mxu0 0.0
    %318 = vmatpush.msra.mxu0 %v243
    %319 = vmatpush.msra.mxu0 %v242
    %320 = vmatmul.f32.gmra.mxu0 %v247
    %v321 = vpop.f32.mrf.mxu0
    %v322 = vadd.f32 %v242, %v321
    %323 = vmatmul.f32.gmra.mxu0 %v250
    %v324 = vpop.f32.mrf.mxu0
    %v325 = vadd.f32 %v243, %v324
    %326 = vdwg.mxu0
    %327 = vmatpush.msra.mxu0 0.0
    %328 = vmatpush.msra.mxu0 0.0
    %329 = vmatpush.msra.mxu0 0.0
    %330 = vmatpush.msra.mxu0 0.0
    %331 = vmatpush.msra.mxu0 0.0
    %332 = vmatpush.msra.mxu0 0.0
    %333 = vmatpush.msra.mxu0 0.0
    %334 = vmatpush.msra.mxu0 0.0
    %335 = vmatpush.msra.mxu0 0.0
    %336 = vmatpush.msra.mxu0 0.0
    %337 = vmatpush.msra.mxu0 0.0
    %338 = vmatpush.msra.mxu0 0.0
    %339 = vmatpush.msra.mxu0 0.0
    %340 = vmatpush.msra.mxu0 0.0
    %341 = vmatpush.msra.mxu0 %v245
    %342 = vmatpush.msra.mxu0 %v244
    %343 = vmatmul.f32.gmra.mxu0 %v276
    %v344 = vpop.f32.mrf.mxu0
    %v345 = vadd.f32 %v244, %v344
    %346 = vmatmul.f32.gmra.mxu0 %v279
    %v347 = vpop.f32.mrf.mxu0
    %v348 = vadd.f32 %v245, %v347
    %349 = vdwg.mxu0
    %v350 = vmul.f32 %v270, %v199
    %v351 = vmul.f32 %v273, %v213
    %v352 = vmul.f32 %v299, %v227
    %v353 = vmul.f32 %v302, %v241
    %v354 = vmul.f32 %v322, %v199
    %v355 = vmul.f32 %v325, %v213
    %v356 = vmul.f32 %v345, %v227
    %v357 = vmul.f32 %v348, %v241
    %v358 = vmul.f32 %v350, %v350
    %v359 = vmul.f32 %v351, %v351
    %v360 = vmul.f32 %v352, %v352
    %v361 = vmul.f32 %v353, %v353
    %v362 = vsub.f32 %v354, %v358
    %v363 = vsub.f32 %v355, %v359
    %v364 = vsub.f32 %v356, %v360
    %v365 = vsub.f32 %v357, %v361
    %v366 = vmax.f32 %v362, 0.0
    %v367 = vmax.f32 %v363, 0.0
    %v368 = vmax.f32 %v364, 0.0
    %v369 = vmax.f32 %v365, 0.0
    %v370 = vadd.f32 %v366, 1e-05
    %v371 = vadd.f32 %v367, 1e-05
    %v372 = vadd.f32 %v368, 1e-05
    %v373 = vadd.f32 %v369, 1e-05
    %v374 = vrsqrt.pop %v370
    %v375 = vmul.f32 %v374, %v370
    %v376 = vmul.f32 %v375, %v374
    %v377 = vmul.f32 0.5, %v376
    %v378 = vsub.f32 1.5, %v377
    %v379 = vmul.f32 %v374, %v378
    %v380 = vmul.f32 %v370, %v379
    %vm381 = vcmp.eq.f32.partialorder %v370, inf
    %v382 = vsel %vm381, %v370, %v380
    %vm383 = vcmp.eq.f32.partialorder %v370, 0.0
    %v384 = vand.u32 %v370, 2147483648
    %v385 = vsel %vm383, %v384, %v382
    %v386 = vrsqrt.pop %v371
    %v387 = vmul.f32 %v386, %v371
    %v388 = vmul.f32 %v387, %v386
    %v389 = vmul.f32 0.5, %v388
    %v390 = vsub.f32 1.5, %v389
    %v391 = vmul.f32 %v386, %v390
    %v392 = vmul.f32 %v371, %v391
    %vm393 = vcmp.eq.f32.partialorder %v371, inf
    %v394 = vsel %vm393, %v371, %v392
    %vm395 = vcmp.eq.f32.partialorder %v371, 0.0
    %v396 = vand.u32 %v371, 2147483648
    %v397 = vsel %vm395, %v396, %v394
    %v398 = vrsqrt.pop %v372
    %v399 = vmul.f32 %v398, %v372
    %v400 = vmul.f32 %v399, %v398
    %v401 = vmul.f32 0.5, %v400
    %v402 = vsub.f32 1.5, %v401
    %v403 = vmul.f32 %v398, %v402
    %v404 = vmul.f32 %v372, %v403
    %vm405 = vcmp.eq.f32.partialorder %v372, inf
    %v406 = vsel %vm405, %v372, %v404
    %vm407 = vcmp.eq.f32.partialorder %v372, 0.0
    %v408 = vand.u32 %v372, 2147483648
    %v409 = vsel %vm407, %v408, %v406
    %v410 = vrsqrt.pop %v373
    %v411 = vmul.f32 %v410, %v373
    %v412 = vmul.f32 %v411, %v410
    %v413 = vmul.f32 0.5, %v412
    %v414 = vsub.f32 1.5, %v413
    %v415 = vmul.f32 %v410, %v414
    %v416 = vmul.f32 %v373, %v415
    %vm417 = vcmp.eq.f32.partialorder %v373, inf
    %v418 = vsel %vm417, %v373, %v416
    %vm419 = vcmp.eq.f32.partialorder %v373, 0.0
    %v420 = vand.u32 %v373, 2147483648
    %v421 = vsel %vm419, %v420, %v418
    %v422 = vperm.slane %v101, 0
    %v423 = vlaneseq
    %v424 = vshrl.u32 %v423, 7
    %426 = vset.pattern.permute.xlu0 %v424
    %427 = vperm.xlu0 %426, %v422
    %v428 = vpop.permute.xlu0 %427
    %v429 = vlaneseq
    %v430 = vshrl.u32 %v429, 7
    %v431 = vadd.s32 %v430, 8
    %432 = vset.pattern.permute.xlu0 %v431
    %433 = vperm.xlu0 %432, %v422
    %v434 = vpop.permute.xlu0 %433
    %v435 = vperm.slane %v101, 1
    %v436 = vlaneseq
    %v437 = vshrl.u32 %v436, 7
    %439 = vset.pattern.permute.xlu0 %v437
    %440 = vperm.xlu0 %439, %v435
    %v441 = vpop.permute.xlu0 %440
    %v442 = vlaneseq
    %v443 = vshrl.u32 %v442, 7
    %v444 = vadd.s32 %v443, 8
    %445 = vset.pattern.permute.xlu0 %v444
    %446 = vperm.xlu0 %445, %v435
    %v447 = vpop.permute.xlu0 %446
    %v448 = vperm.slane %v101, 2
    %v449 = vlaneseq
    %v450 = vshrl.u32 %v449, 7
    %452 = vset.pattern.permute.xlu0 %v450
    %453 = vperm.xlu0 %452, %v448
    %v454 = vpop.permute.xlu0 %453
    %v455 = vlaneseq
    %v456 = vshrl.u32 %v455, 7
    %v457 = vadd.s32 %v456, 8
    %458 = vset.pattern.permute.xlu0 %v457
    %459 = vperm.xlu0 %458, %v448
    %v460 = vpop.permute.xlu0 %459
    %v461 = vperm.slane %v101, 3
    %v462 = vlaneseq
    %v463 = vshrl.u32 %v462, 7
    %465 = vset.pattern.permute.xlu0 %v463
    %466 = vperm.xlu0 %465, %v461
    %v467 = vpop.permute.xlu0 %466
    %v468 = vlaneseq
    %v469 = vshrl.u32 %v468, 7
    %v470 = vadd.s32 %v469, 8
    %471 = vset.pattern.permute.xlu0 %v470
    %472 = vperm.xlu0 %471, %v461
    %v473 = vpop.permute.xlu0 %472
    %v474 = vperm.slane %v101, 4
    %v475 = vlaneseq
    %v476 = vshrl.u32 %v475, 7
    %478 = vset.pattern.permute.xlu0 %v476
    %479 = vperm.xlu0 %478, %v474
    %v480 = vpop.permute.xlu0 %479
    %v481 = vlaneseq
    %v482 = vshrl.u32 %v481, 7
    %v483 = vadd.s32 %v482, 8
    %484 = vset.pattern.permute.xlu0 %v483
    %485 = vperm.xlu0 %484, %v474
    %v486 = vpop.permute.xlu0 %485
    %v487 = vperm.slane %v101, 5
    %v488 = vlaneseq
    %v489 = vshrl.u32 %v488, 7
    %491 = vset.pattern.permute.xlu0 %v489
    %492 = vperm.xlu0 %491, %v487
    %v493 = vpop.permute.xlu0 %492
    %v494 = vlaneseq
    %v495 = vshrl.u32 %v494, 7
    %v496 = vadd.s32 %v495, 8
    %497 = vset.pattern.permute.xlu0 %v496
    %498 = vperm.xlu0 %497, %v487
    %v499 = vpop.permute.xlu0 %498
    %v500 = vperm.slane %v101, 6
    %v501 = vlaneseq
    %v502 = vshrl.u32 %v501, 7
    %504 = vset.pattern.permute.xlu0 %v502
    %505 = vperm.xlu0 %504, %v500
    %v506 = vpop.permute.xlu0 %505
    %v507 = vlaneseq
    %v508 = vshrl.u32 %v507, 7
    %v509 = vadd.s32 %v508, 8
    %510 = vset.pattern.permute.xlu0 %v509
    %511 = vperm.xlu0 %510, %v500
    %v512 = vpop.permute.xlu0 %511
    %v513 = vperm.slane %v101, 7
    %v514 = vlaneseq
    %v515 = vshrl.u32 %v514, 7
    %517 = vset.pattern.permute.xlu0 %v515
    %518 = vperm.xlu0 %517, %v513
    %v519 = vpop.permute.xlu0 %518
    %v520 = vlaneseq
    %v521 = vshrl.u32 %v520, 7
    %v522 = vadd.s32 %v521, 8
    %523 = vset.pattern.permute.xlu0 %v522
    %524 = vperm.xlu0 %523, %v513
    %v525 = vpop.permute.xlu0 %524
    %v526 = vperm.slane %v102, 0
    %v527 = vlaneseq
    %v528 = vshrl.u32 %v527, 7
    %530 = vset.pattern.permute.xlu0 %v528
    %531 = vperm.xlu0 %530, %v526
    %v532 = vpop.permute.xlu0 %531
    %v533 = vlaneseq
    %v534 = vshrl.u32 %v533, 7
    %v535 = vadd.s32 %v534, 8
    %536 = vset.pattern.permute.xlu0 %v535
    %537 = vperm.xlu0 %536, %v526
    %v538 = vpop.permute.xlu0 %537
    %v539 = vperm.slane %v102, 1
    %v540 = vlaneseq
    %v541 = vshrl.u32 %v540, 7
    %543 = vset.pattern.permute.xlu0 %v541
    %544 = vperm.xlu0 %543, %v539
    %v545 = vpop.permute.xlu0 %544
    %v546 = vlaneseq
    %v547 = vshrl.u32 %v546, 7
    %v548 = vadd.s32 %v547, 8
    %549 = vset.pattern.permute.xlu0 %v548
    %550 = vperm.xlu0 %549, %v539
    %v551 = vpop.permute.xlu0 %550
    %v552 = vperm.slane %v102, 2
    %v553 = vlaneseq
    %v554 = vshrl.u32 %v553, 7
    %556 = vset.pattern.permute.xlu0 %v554
    %557 = vperm.xlu0 %556, %v552
    %v558 = vpop.permute.xlu0 %557
    %v559 = vlaneseq
    %v560 = vshrl.u32 %v559, 7
    %v561 = vadd.s32 %v560, 8
    %562 = vset.pattern.permute.xlu0 %v561
    %563 = vperm.xlu0 %562, %v552
    %v564 = vpop.permute.xlu0 %563
    %v565 = vperm.slane %v102, 3
    %v566 = vlaneseq
    %v567 = vshrl.u32 %v566, 7
    %569 = vset.pattern.permute.xlu0 %v567
    %570 = vperm.xlu0 %569, %v565
    %v571 = vpop.permute.xlu0 %570
    %v572 = vlaneseq
    %v573 = vshrl.u32 %v572, 7
    %v574 = vadd.s32 %v573, 8
    %575 = vset.pattern.permute.xlu0 %v574
    %576 = vperm.xlu0 %575, %v565
    %v577 = vpop.permute.xlu0 %576
    %v578 = vperm.slane %v102, 4
    %v579 = vlaneseq
    %v580 = vshrl.u32 %v579, 7
    %582 = vset.pattern.permute.xlu0 %v580
    %583 = vperm.xlu0 %582, %v578
    %v584 = vpop.permute.xlu0 %583
    %v585 = vlaneseq
    %v586 = vshrl.u32 %v585, 7
    %v587 = vadd.s32 %v586, 8
    %588 = vset.pattern.permute.xlu0 %v587
    %589 = vperm.xlu0 %588, %v578
    %v590 = vpop.permute.xlu0 %589
    %v591 = vperm.slane %v102, 5
    %v592 = vlaneseq
    %v593 = vshrl.u32 %v592, 7
    %595 = vset.pattern.permute.xlu0 %v593
    %596 = vperm.xlu0 %595, %v591
    %v597 = vpop.permute.xlu0 %596
    %v598 = vlaneseq
    %v599 = vshrl.u32 %v598, 7
    %v600 = vadd.s32 %v599, 8
    %601 = vset.pattern.permute.xlu0 %v600
    %602 = vperm.xlu0 %601, %v591
    %v603 = vpop.permute.xlu0 %602
    %v604 = vperm.slane %v102, 6
    %v605 = vlaneseq
    %v606 = vshrl.u32 %v605, 7
    %608 = vset.pattern.permute.xlu0 %v606
    %609 = vperm.xlu0 %608, %v604
    %v610 = vpop.permute.xlu0 %609
    %v611 = vlaneseq
    %v612 = vshrl.u32 %v611, 7
    %v613 = vadd.s32 %v612, 8
    %614 = vset.pattern.permute.xlu0 %v613
    %615 = vperm.xlu0 %614, %v604
    %v616 = vpop.permute.xlu0 %615
    %v617 = vperm.slane %v102, 7
    %v618 = vlaneseq
    %v619 = vshrl.u32 %v618, 7
    %621 = vset.pattern.permute.xlu0 %v619
    %622 = vperm.xlu0 %621, %v617
    %v623 = vpop.permute.xlu0 %622
    %v624 = vlaneseq
    %v625 = vshrl.u32 %v624, 7
    %v626 = vadd.s32 %v625, 8
    %627 = vset.pattern.permute.xlu0 %v626
    %628 = vperm.xlu0 %627, %v617
    %v629 = vpop.permute.xlu0 %628
    %vm630 = vcmp.gt.f32.partialorder %v428, 0.0
    %vm631 = vcmp.gt.f32.partialorder %v434, 0.0
    %vm632 = vcmp.gt.f32.partialorder %v441, 0.0
    %vm633 = vcmp.gt.f32.partialorder %v447, 0.0
    %vm634 = vcmp.gt.f32.partialorder %v454, 0.0
    %vm635 = vcmp.gt.f32.partialorder %v460, 0.0
    %vm636 = vcmp.gt.f32.partialorder %v467, 0.0
    %vm637 = vcmp.gt.f32.partialorder %v473, 0.0
    %vm638 = vcmp.gt.f32.partialorder %v480, 0.0
    %vm639 = vcmp.gt.f32.partialorder %v486, 0.0
    %vm640 = vcmp.gt.f32.partialorder %v493, 0.0
    %vm641 = vcmp.gt.f32.partialorder %v499, 0.0
    %vm642 = vcmp.gt.f32.partialorder %v506, 0.0
    %vm643 = vcmp.gt.f32.partialorder %v512, 0.0
    %vm644 = vcmp.gt.f32.partialorder %v519, 0.0
    %vm645 = vcmp.gt.f32.partialorder %v525, 0.0
    %vm646 = vcmp.gt.f32.partialorder %v532, 0.0
    %vm647 = vcmp.gt.f32.partialorder %v538, 0.0
    %vm648 = vcmp.gt.f32.partialorder %v545, 0.0
    %vm649 = vcmp.gt.f32.partialorder %v551, 0.0
    %vm650 = vcmp.gt.f32.partialorder %v558, 0.0
    %vm651 = vcmp.gt.f32.partialorder %v564, 0.0
    %vm652 = vcmp.gt.f32.partialorder %v571, 0.0
    %vm653 = vcmp.gt.f32.partialorder %v577, 0.0
    %vm654 = vcmp.gt.f32.partialorder %v584, 0.0
    %vm655 = vcmp.gt.f32.partialorder %v590, 0.0
    %vm656 = vcmp.gt.f32.partialorder %v597, 0.0
    %vm657 = vcmp.gt.f32.partialorder %v603, 0.0
    %vm658 = vcmp.gt.f32.partialorder %v610, 0.0
    %vm659 = vcmp.gt.f32.partialorder %v616, 0.0
    %vm660 = vcmp.gt.f32.partialorder %v623, 0.0
    %vm661 = vcmp.gt.f32.partialorder %v629, 0.0
    %v664 = vrot.slane %v78, 1
    %v665 = vrot.slane %v78, 2
    %v666 = vrot.slane %v78, 3
    %v667 = vrot.slane %v78, 4
    %v668 = vrot.slane %v78, 5
    %v669 = vrot.slane %v78, 6
    %v670 = vrot.slane %v78, 7
    %v671 = vrot.slane %v81, 1
    %v672 = vrot.slane %v81, 2
    %v673 = vrot.slane %v81, 3
    %v674 = vrot.slane %v81, 4
    %v675 = vrot.slane %v81, 5
    %v676 = vrot.slane %v81, 6
    %v677 = vrot.slane %v81, 7
    %v678 = vsel %vm630, 1, 0
    %v679 = vsel %vm631, 1, 0
    %v680 = vsel %vm632, 1, 0
    %v681 = vsel %vm633, 1, 0
    %v682 = vsel %vm634, 1, 0
    %v683 = vsel %vm635, 1, 0
    %v684 = vsel %vm636, 1, 0
    %v685 = vsel %vm637, 1, 0
    %v686 = vsel %vm638, 1, 0
    %v687 = vsel %vm639, 1, 0
    %v688 = vsel %vm640, 1, 0
    %v689 = vsel %vm641, 1, 0
    %v690 = vsel %vm642, 1, 0
    %v691 = vsel %vm643, 1, 0
    %v692 = vsel %vm644, 1, 0
    %v693 = vsel %vm645, 1, 0
    %v694 = vsel %vm646, 1, 0
    %v695 = vsel %vm647, 1, 0
    %v696 = vsel %vm648, 1, 0
    %v697 = vsel %vm649, 1, 0
    %v698 = vsel %vm650, 1, 0
    %v699 = vsel %vm651, 1, 0
    %v700 = vsel %vm652, 1, 0
    %v701 = vsel %vm653, 1, 0
    %v702 = vsel %vm654, 1, 0
    %v703 = vsel %vm655, 1, 0
    %v704 = vsel %vm656, 1, 0
    %v705 = vsel %vm657, 1, 0
    %v706 = vsel %vm658, 1, 0
    %v707 = vsel %vm659, 1, 0
    %v708 = vsel %vm660, 1, 0
    %v709 = vsel %vm661, 1, 0
    %vm710 = vcmp.eq.s32.totalorder %v678, 1
    %vm711 = vcmp.eq.s32.totalorder %v679, 1
    %vm712 = vcmp.eq.s32.totalorder %v680, 1
    %vm713 = vcmp.eq.s32.totalorder %v681, 1
    %vm714 = vcmp.eq.s32.totalorder %v682, 1
    %vm715 = vcmp.eq.s32.totalorder %v683, 1
    %vm716 = vcmp.eq.s32.totalorder %v684, 1
    %vm717 = vcmp.eq.s32.totalorder %v685, 1
    %vm718 = vcmp.eq.s32.totalorder %v686, 1
    %vm719 = vcmp.eq.s32.totalorder %v687, 1
    %vm720 = vcmp.eq.s32.totalorder %v688, 1
    %vm721 = vcmp.eq.s32.totalorder %v689, 1
    %vm722 = vcmp.eq.s32.totalorder %v690, 1
    %vm723 = vcmp.eq.s32.totalorder %v691, 1
    %vm724 = vcmp.eq.s32.totalorder %v692, 1
    %vm725 = vcmp.eq.s32.totalorder %v693, 1
    %vm726 = vcmp.eq.s32.totalorder %v694, 1
    %vm727 = vcmp.eq.s32.totalorder %v695, 1
    %vm728 = vcmp.eq.s32.totalorder %v696, 1
    %vm729 = vcmp.eq.s32.totalorder %v697, 1
    %vm730 = vcmp.eq.s32.totalorder %v698, 1
    %vm731 = vcmp.eq.s32.totalorder %v699, 1
    %vm732 = vcmp.eq.s32.totalorder %v700, 1
    %vm733 = vcmp.eq.s32.totalorder %v701, 1
    %vm734 = vcmp.eq.s32.totalorder %v702, 1
    %vm735 = vcmp.eq.s32.totalorder %v703, 1
    %vm736 = vcmp.eq.s32.totalorder %v704, 1
    %vm737 = vcmp.eq.s32.totalorder %v705, 1
    %vm738 = vcmp.eq.s32.totalorder %v706, 1
    %vm739 = vcmp.eq.s32.totalorder %v707, 1
    %vm740 = vcmp.eq.s32.totalorder %v708, 1
    %vm741 = vcmp.eq.s32.totalorder %v709, 1
    %v742 = vperm.slane %v78, 0
    %v743 = vperm.slane %v664, 0
    %v744 = vperm.slane %v665, 0
    %v745 = vperm.slane %v666, 0
    %v746 = vperm.slane %v667, 0
    %v747 = vperm.slane %v668, 0
    %v748 = vperm.slane %v669, 0
    %v749 = vperm.slane %v670, 0
    %v750 = vperm.slane %v81, 0
    %v751 = vperm.slane %v671, 0
    %v752 = vperm.slane %v672, 0
    %v753 = vperm.slane %v673, 0
    %v754 = vperm.slane %v674, 0
    %v755 = vperm.slane %v675, 0
    %v756 = vperm.slane %v676, 0
    %v757 = vperm.slane %v677, 0
    %v774 = vsel %vm710, %v742, -1e+30
    %v775 = vsel %vm711, %v742, -1e+30
    %v776 = vsel %vm712, %v743, -1e+30
    %v777 = vsel %vm713, %v743, -1e+30
    %v778 = vsel %vm714, %v744, -1e+30
    %v779 = vsel %vm715, %v744, -1e+30
    %v780 = vsel %vm716, %v745, -1e+30
    %v781 = vsel %vm717, %v745, -1e+30
    %v782 = vsel %vm718, %v746, -1e+30
    %v783 = vsel %vm719, %v746, -1e+30
    %v784 = vsel %vm720, %v747, -1e+30
    %v785 = vsel %vm721, %v747, -1e+30
    %v786 = vsel %vm722, %v748, -1e+30
    %v787 = vsel %vm723, %v748, -1e+30
    %v788 = vsel %vm724, %v749, -1e+30
    %v789 = vsel %vm725, %v749, -1e+30
    %v790 = vsel %vm726, %v750, -1e+30
    %v791 = vsel %vm727, %v750, -1e+30
    %v792 = vsel %vm728, %v751, -1e+30
    %v793 = vsel %vm729, %v751, -1e+30
    %v794 = vsel %vm730, %v752, -1e+30
    %v795 = vsel %vm731, %v752, -1e+30
    %v796 = vsel %vm732, %v753, -1e+30
    %v797 = vsel %vm733, %v753, -1e+30
    %v798 = vsel %vm734, %v754, -1e+30
    %v799 = vsel %vm735, %v754, -1e+30
    %v800 = vsel %vm736, %v755, -1e+30
    %v801 = vsel %vm737, %v755, -1e+30
    %v802 = vsel %vm738, %v756, -1e+30
    %v803 = vsel %vm739, %v756, -1e+30
    %v804 = vsel %vm740, %v757, -1e+30
    %v805 = vsel %vm741, %v757, -1e+30
    %vm806 = vcmask 261120
    %v807 = vsel %vm806, %v774, -inf
    %v808 = vsel %vm806, %v776, -inf
    %v809 = vsel %vm806, %v778, -inf
    %v810 = vmax.f32 %v807, %v809
    %v811 = vsel %vm806, %v780, -inf
    %v812 = vmax.f32 %v808, %v811
    %v813 = vsel %vm806, %v782, -inf
    %v814 = vmax.f32 %v810, %v813
    %v815 = vsel %vm806, %v784, -inf
    %v816 = vmax.f32 %v812, %v815
    %v817 = vsel %vm806, %v786, -inf
    %v818 = vmax.f32 %v814, %v817
    %v819 = vsel %vm806, %v788, -inf
    %v820 = vmax.f32 %v816, %v819
    %v821 = vsel %vm806, %v790, -inf
    %v822 = vmax.f32 %v818, %v821
    %v823 = vsel %vm806, %v792, -inf
    %v824 = vmax.f32 %v820, %v823
    %v825 = vsel %vm806, %v794, -inf
    %v826 = vmax.f32 %v822, %v825
    %v827 = vsel %vm806, %v796, -inf
    %v828 = vmax.f32 %v824, %v827
    %v829 = vsel %vm806, %v798, -inf
    %v830 = vmax.f32 %v826, %v829
    %v831 = vsel %vm806, %v800, -inf
    %v832 = vmax.f32 %v828, %v831
    %v833 = vsel %vm806, %v802, -inf
    %v834 = vmax.f32 %v830, %v833
    %v835 = vsel %vm806, %v804, -inf
    %v836 = vmax.f32 %v832, %v835
    %v837 = vmax.f32 %v834, %v836
    %v838 = vsel %vm806, %v775, -inf
    %v839 = vsel %vm806, %v777, -inf
    %v840 = vsel %vm806, %v779, -inf
    %v841 = vmax.f32 %v838, %v840
    %v842 = vsel %vm806, %v781, -inf
    %v843 = vmax.f32 %v839, %v842
    %v844 = vsel %vm806, %v783, -inf
    %v845 = vmax.f32 %v841, %v844
    %v846 = vsel %vm806, %v785, -inf
    %v847 = vmax.f32 %v843, %v846
    %v848 = vsel %vm806, %v787, -inf
    %v849 = vmax.f32 %v845, %v848
    %v850 = vsel %vm806, %v789, -inf
    %v851 = vmax.f32 %v847, %v850
    %v852 = vsel %vm806, %v791, -inf
    %v853 = vmax.f32 %v849, %v852
    %v854 = vsel %vm806, %v793, -inf
    %v855 = vmax.f32 %v851, %v854
    %v856 = vsel %vm806, %v795, -inf
    %v857 = vmax.f32 %v853, %v856
    %v858 = vsel %vm806, %v797, -inf
    %v859 = vmax.f32 %v855, %v858
    %v860 = vsel %vm806, %v799, -inf
    %v861 = vmax.f32 %v857, %v860
    %v862 = vsel %vm806, %v801, -inf
    %v863 = vmax.f32 %v859, %v862
    %v864 = vsel %vm806, %v803, -inf
    %v865 = vmax.f32 %v861, %v864
    %v866 = vsel %vm806, %v805, -inf
    %v867 = vmax.f32 %v863, %v866
    %v868 = vmax.f32 %v865, %v867
    %v869 = vmax.f32 %v78, %v837
    %v870 = vmax.f32 %v81, %v868
    %v871 = vsel %vm710, %v742, 1e+30
    %v872 = vsel %vm711, %v742, 1e+30
    %v873 = vsel %vm712, %v743, 1e+30
    %v874 = vsel %vm713, %v743, 1e+30
    %v875 = vsel %vm714, %v744, 1e+30
    %v876 = vsel %vm715, %v744, 1e+30
    %v877 = vsel %vm716, %v745, 1e+30
    %v878 = vsel %vm717, %v745, 1e+30
    %v879 = vsel %vm718, %v746, 1e+30
    %v880 = vsel %vm719, %v746, 1e+30
    %v881 = vsel %vm720, %v747, 1e+30
    %v882 = vsel %vm721, %v747, 1e+30
    %v883 = vsel %vm722, %v748, 1e+30
    %v884 = vsel %vm723, %v748, 1e+30
    %v885 = vsel %vm724, %v749, 1e+30
    %v886 = vsel %vm725, %v749, 1e+30
    %v887 = vsel %vm726, %v750, 1e+30
    %v888 = vsel %vm727, %v750, 1e+30
    %v889 = vsel %vm728, %v751, 1e+30
    %v890 = vsel %vm729, %v751, 1e+30
    %v891 = vsel %vm730, %v752, 1e+30
    %v892 = vsel %vm731, %v752, 1e+30
    %v893 = vsel %vm732, %v753, 1e+30
    %v894 = vsel %vm733, %v753, 1e+30
    %v895 = vsel %vm734, %v754, 1e+30
    %v896 = vsel %vm735, %v754, 1e+30
    %v897 = vsel %vm736, %v755, 1e+30
    %v898 = vsel %vm737, %v755, 1e+30
    %v899 = vsel %vm738, %v756, 1e+30
    %v900 = vsel %vm739, %v756, 1e+30
    %v901 = vsel %vm740, %v757, 1e+30
    %v902 = vsel %vm741, %v757, 1e+30
    %v903 = vsel %vm806, %v871, inf
    %v904 = vsel %vm806, %v873, inf
    %v905 = vsel %vm806, %v875, inf
    %v906 = vmin.f32 %v903, %v905
    %v907 = vsel %vm806, %v877, inf
    %v908 = vmin.f32 %v904, %v907
    %v909 = vsel %vm806, %v879, inf
    %v910 = vmin.f32 %v906, %v909
    %v911 = vsel %vm806, %v881, inf
    %v912 = vmin.f32 %v908, %v911
    %v913 = vsel %vm806, %v883, inf
    %v914 = vmin.f32 %v910, %v913
    %v915 = vsel %vm806, %v885, inf
    %v916 = vmin.f32 %v912, %v915
    %v917 = vsel %vm806, %v887, inf
    %v918 = vmin.f32 %v914, %v917
    %v919 = vsel %vm806, %v889, inf
    %v920 = vmin.f32 %v916, %v919
    %v921 = vsel %vm806, %v891, inf
    %v922 = vmin.f32 %v918, %v921
    %v923 = vsel %vm806, %v893, inf
    %v924 = vmin.f32 %v920, %v923
    %v925 = vsel %vm806, %v895, inf
    %v926 = vmin.f32 %v922, %v925
    %v927 = vsel %vm806, %v897, inf
    %v928 = vmin.f32 %v924, %v927
    %v929 = vsel %vm806, %v899, inf
    %v930 = vmin.f32 %v926, %v929
    %v931 = vsel %vm806, %v901, inf
    %v932 = vmin.f32 %v928, %v931
    %v933 = vmin.f32 %v930, %v932
    %v934 = vsel %vm806, %v872, inf
    %v935 = vsel %vm806, %v874, inf
    %v936 = vsel %vm806, %v876, inf
    %v937 = vmin.f32 %v934, %v936
    %v938 = vsel %vm806, %v878, inf
    %v939 = vmin.f32 %v935, %v938
    %v940 = vsel %vm806, %v880, inf
    %v941 = vmin.f32 %v937, %v940
    %v942 = vsel %vm806, %v882, inf
    %v943 = vmin.f32 %v939, %v942
    %v944 = vsel %vm806, %v884, inf
    %v945 = vmin.f32 %v941, %v944
    %v946 = vsel %vm806, %v886, inf
    %v947 = vmin.f32 %v943, %v946
    %v948 = vsel %vm806, %v888, inf
    %v949 = vmin.f32 %v945, %v948
    %v950 = vsel %vm806, %v890, inf
    %v951 = vmin.f32 %v947, %v950
    %v952 = vsel %vm806, %v892, inf
    %v953 = vmin.f32 %v949, %v952
    %v954 = vsel %vm806, %v894, inf
    %v955 = vmin.f32 %v951, %v954
    %v956 = vsel %vm806, %v896, inf
    %v957 = vmin.f32 %v953, %v956
    %v958 = vsel %vm806, %v898, inf
    %v959 = vmin.f32 %v955, %v958
    %v960 = vsel %vm806, %v900, inf
    %v961 = vmin.f32 %v957, %v960
    %v962 = vsel %vm806, %v902, inf
    %v963 = vmin.f32 %v959, %v962
    %v964 = vmin.f32 %v961, %v963
    %v965 = vmin.f32 %v78, %v933
    %v966 = vmin.f32 %v81, %v964
    %v967 = vperm.slane %v103, 0
    %v968 = vlaneseq
    %v969 = vshrl.u32 %v968, 7
    %971 = vset.pattern.permute.xlu0 %v969
    %972 = vperm.xlu0 %971, %v967
    %v973 = vpop.permute.xlu0 %972
    %v974 = vlaneseq
    %v975 = vshrl.u32 %v974, 7
    %v976 = vadd.s32 %v975, 8
    %977 = vset.pattern.permute.xlu0 %v976
    %978 = vperm.xlu0 %977, %v967
    %v979 = vpop.permute.xlu0 %978
    %v980 = vperm.slane %v103, 1
    %v981 = vlaneseq
    %v982 = vshrl.u32 %v981, 7
    %984 = vset.pattern.permute.xlu0 %v982
    %985 = vperm.xlu0 %984, %v980
    %v986 = vpop.permute.xlu0 %985
    %v987 = vlaneseq
    %v988 = vshrl.u32 %v987, 7
    %v989 = vadd.s32 %v988, 8
    %990 = vset.pattern.permute.xlu0 %v989
    %991 = vperm.xlu0 %990, %v980
    %v992 = vpop.permute.xlu0 %991
    %v993 = vperm.slane %v103, 2
    %v994 = vlaneseq
    %v995 = vshrl.u32 %v994, 7
    %997 = vset.pattern.permute.xlu0 %v995
    %998 = vperm.xlu0 %997, %v993
    %v999 = vpop.permute.xlu0 %998
    %v1000 = vlaneseq
    %v1001 = vshrl.u32 %v1000, 7
    %v1002 = vadd.s32 %v1001, 8
    %1003 = vset.pattern.permute.xlu0 %v1002
    %1004 = vperm.xlu0 %1003, %v993
    %v1005 = vpop.permute.xlu0 %1004
    %v1006 = vperm.slane %v103, 3
    %v1007 = vlaneseq
    %v1008 = vshrl.u32 %v1007, 7
    %1010 = vset.pattern.permute.xlu0 %v1008
    %1011 = vperm.xlu0 %1010, %v1006
    %v1012 = vpop.permute.xlu0 %1011
    %v1013 = vlaneseq
    %v1014 = vshrl.u32 %v1013, 7
    %v1015 = vadd.s32 %v1014, 8
    %1016 = vset.pattern.permute.xlu0 %v1015
    %1017 = vperm.xlu0 %1016, %v1006
    %v1018 = vpop.permute.xlu0 %1017
    %v1019 = vperm.slane %v103, 4
    %v1020 = vlaneseq
    %v1021 = vshrl.u32 %v1020, 7
    %1023 = vset.pattern.permute.xlu0 %v1021
    %1024 = vperm.xlu0 %1023, %v1019
    %v1025 = vpop.permute.xlu0 %1024
    %v1026 = vlaneseq
    %v1027 = vshrl.u32 %v1026, 7
    %v1028 = vadd.s32 %v1027, 8
    %1029 = vset.pattern.permute.xlu0 %v1028
    %1030 = vperm.xlu0 %1029, %v1019
    %v1031 = vpop.permute.xlu0 %1030
    %v1032 = vperm.slane %v103, 5
    %v1033 = vlaneseq
    %v1034 = vshrl.u32 %v1033, 7
    %1036 = vset.pattern.permute.xlu0 %v1034
    %1037 = vperm.xlu0 %1036, %v1032
    %v1038 = vpop.permute.xlu0 %1037
    %v1039 = vlaneseq
    %v1040 = vshrl.u32 %v1039, 7
    %v1041 = vadd.s32 %v1040, 8
    %1042 = vset.pattern.permute.xlu0 %v1041
    %1043 = vperm.xlu0 %1042, %v1032
    %v1044 = vpop.permute.xlu0 %1043
    %v1045 = vperm.slane %v103, 6
    %v1046 = vlaneseq
    %v1047 = vshrl.u32 %v1046, 7
    %1049 = vset.pattern.permute.xlu0 %v1047
    %1050 = vperm.xlu0 %1049, %v1045
    %v1051 = vpop.permute.xlu0 %1050
    %v1052 = vlaneseq
    %v1053 = vshrl.u32 %v1052, 7
    %v1054 = vadd.s32 %v1053, 8
    %1055 = vset.pattern.permute.xlu0 %v1054
    %1056 = vperm.xlu0 %1055, %v1045
    %v1057 = vpop.permute.xlu0 %1056
    %v1058 = vperm.slane %v103, 7
    %v1059 = vlaneseq
    %v1060 = vshrl.u32 %v1059, 7
    %1062 = vset.pattern.permute.xlu0 %v1060
    %1063 = vperm.xlu0 %1062, %v1058
    %v1064 = vpop.permute.xlu0 %1063
    %v1065 = vlaneseq
    %v1066 = vshrl.u32 %v1065, 7
    %v1067 = vadd.s32 %v1066, 8
    %1068 = vset.pattern.permute.xlu0 %v1067
    %1069 = vperm.xlu0 %1068, %v1058
    %v1070 = vpop.permute.xlu0 %1069
    %v1071 = vperm.slane %v104, 0
    %v1072 = vlaneseq
    %v1073 = vshrl.u32 %v1072, 7
    %1075 = vset.pattern.permute.xlu0 %v1073
    %1076 = vperm.xlu0 %1075, %v1071
    %v1077 = vpop.permute.xlu0 %1076
    %v1078 = vlaneseq
    %v1079 = vshrl.u32 %v1078, 7
    %v1080 = vadd.s32 %v1079, 8
    %1081 = vset.pattern.permute.xlu0 %v1080
    %1082 = vperm.xlu0 %1081, %v1071
    %v1083 = vpop.permute.xlu0 %1082
    %v1084 = vperm.slane %v104, 1
    %v1085 = vlaneseq
    %v1086 = vshrl.u32 %v1085, 7
    %1088 = vset.pattern.permute.xlu0 %v1086
    %1089 = vperm.xlu0 %1088, %v1084
    %v1090 = vpop.permute.xlu0 %1089
    %v1091 = vlaneseq
    %v1092 = vshrl.u32 %v1091, 7
    %v1093 = vadd.s32 %v1092, 8
    %1094 = vset.pattern.permute.xlu0 %v1093
    %1095 = vperm.xlu0 %1094, %v1084
    %v1096 = vpop.permute.xlu0 %1095
    %v1097 = vperm.slane %v104, 2
    %v1098 = vlaneseq
    %v1099 = vshrl.u32 %v1098, 7
    %1101 = vset.pattern.permute.xlu0 %v1099
    %1102 = vperm.xlu0 %1101, %v1097
    %v1103 = vpop.permute.xlu0 %1102
    %v1104 = vlaneseq
    %v1105 = vshrl.u32 %v1104, 7
    %v1106 = vadd.s32 %v1105, 8
    %1107 = vset.pattern.permute.xlu0 %v1106
    %1108 = vperm.xlu0 %1107, %v1097
    %v1109 = vpop.permute.xlu0 %1108
    %v1110 = vperm.slane %v104, 3
    %v1111 = vlaneseq
    %v1112 = vshrl.u32 %v1111, 7
    %1114 = vset.pattern.permute.xlu0 %v1112
    %1115 = vperm.xlu0 %1114, %v1110
    %v1116 = vpop.permute.xlu0 %1115
    %v1117 = vlaneseq
    %v1118 = vshrl.u32 %v1117, 7
    %v1119 = vadd.s32 %v1118, 8
    %1120 = vset.pattern.permute.xlu0 %v1119
    %1121 = vperm.xlu0 %1120, %v1110
    %v1122 = vpop.permute.xlu0 %1121
    %v1123 = vperm.slane %v104, 4
    %v1124 = vlaneseq
    %v1125 = vshrl.u32 %v1124, 7
    %1127 = vset.pattern.permute.xlu0 %v1125
    %1128 = vperm.xlu0 %1127, %v1123
    %v1129 = vpop.permute.xlu0 %1128
    %v1130 = vlaneseq
    %v1131 = vshrl.u32 %v1130, 7
    %v1132 = vadd.s32 %v1131, 8
    %1133 = vset.pattern.permute.xlu0 %v1132
    %1134 = vperm.xlu0 %1133, %v1123
    %v1135 = vpop.permute.xlu0 %1134
    %v1136 = vperm.slane %v104, 5
    %v1137 = vlaneseq
    %v1138 = vshrl.u32 %v1137, 7
    %1140 = vset.pattern.permute.xlu0 %v1138
    %1141 = vperm.xlu0 %1140, %v1136
    %v1142 = vpop.permute.xlu0 %1141
    %v1143 = vlaneseq
    %v1144 = vshrl.u32 %v1143, 7
    %v1145 = vadd.s32 %v1144, 8
    %1146 = vset.pattern.permute.xlu0 %v1145
    %1147 = vperm.xlu0 %1146, %v1136
    %v1148 = vpop.permute.xlu0 %1147
    %v1149 = vperm.slane %v104, 6
    %v1150 = vlaneseq
    %v1151 = vshrl.u32 %v1150, 7
    %1153 = vset.pattern.permute.xlu0 %v1151
    %1154 = vperm.xlu0 %1153, %v1149
    %v1155 = vpop.permute.xlu0 %1154
    %v1156 = vlaneseq
    %v1157 = vshrl.u32 %v1156, 7
    %v1158 = vadd.s32 %v1157, 8
    %1159 = vset.pattern.permute.xlu0 %v1158
    %1160 = vperm.xlu0 %1159, %v1149
    %v1161 = vpop.permute.xlu0 %1160
    %v1162 = vperm.slane %v104, 7
    %v1163 = vlaneseq
    %v1164 = vshrl.u32 %v1163, 7
    %1166 = vset.pattern.permute.xlu0 %v1164
    %1167 = vperm.xlu0 %1166, %v1162
    %v1168 = vpop.permute.xlu0 %1167
    %v1169 = vlaneseq
    %v1170 = vshrl.u32 %v1169, 7
    %v1171 = vadd.s32 %v1170, 8
    %1172 = vset.pattern.permute.xlu0 %v1171
    %1173 = vperm.xlu0 %1172, %v1162
    %v1174 = vpop.permute.xlu0 %1173
    %vm1175 = vcmp.gt.f32.partialorder %v973, 0.0
    %vm1176 = vcmp.gt.f32.partialorder %v979, 0.0
    %vm1177 = vcmp.gt.f32.partialorder %v986, 0.0
    %vm1178 = vcmp.gt.f32.partialorder %v992, 0.0
    %vm1179 = vcmp.gt.f32.partialorder %v999, 0.0
    %vm1180 = vcmp.gt.f32.partialorder %v1005, 0.0
    %vm1181 = vcmp.gt.f32.partialorder %v1012, 0.0
    %vm1182 = vcmp.gt.f32.partialorder %v1018, 0.0
    %vm1183 = vcmp.gt.f32.partialorder %v1025, 0.0
    %vm1184 = vcmp.gt.f32.partialorder %v1031, 0.0
    %vm1185 = vcmp.gt.f32.partialorder %v1038, 0.0
    %vm1186 = vcmp.gt.f32.partialorder %v1044, 0.0
    %vm1187 = vcmp.gt.f32.partialorder %v1051, 0.0
    %vm1188 = vcmp.gt.f32.partialorder %v1057, 0.0
    %vm1189 = vcmp.gt.f32.partialorder %v1064, 0.0
    %vm1190 = vcmp.gt.f32.partialorder %v1070, 0.0
    %vm1191 = vcmp.gt.f32.partialorder %v1077, 0.0
    %vm1192 = vcmp.gt.f32.partialorder %v1083, 0.0
    %vm1193 = vcmp.gt.f32.partialorder %v1090, 0.0
    %vm1194 = vcmp.gt.f32.partialorder %v1096, 0.0
    %vm1195 = vcmp.gt.f32.partialorder %v1103, 0.0
    %vm1196 = vcmp.gt.f32.partialorder %v1109, 0.0
    %vm1197 = vcmp.gt.f32.partialorder %v1116, 0.0
    %vm1198 = vcmp.gt.f32.partialorder %v1122, 0.0
    %vm1199 = vcmp.gt.f32.partialorder %v1129, 0.0
    %vm1200 = vcmp.gt.f32.partialorder %v1135, 0.0
    %vm1201 = vcmp.gt.f32.partialorder %v1142, 0.0
    %vm1202 = vcmp.gt.f32.partialorder %v1148, 0.0
    %vm1203 = vcmp.gt.f32.partialorder %v1155, 0.0
    %vm1204 = vcmp.gt.f32.partialorder %v1161, 0.0
    %vm1205 = vcmp.gt.f32.partialorder %v1168, 0.0
    %vm1206 = vcmp.gt.f32.partialorder %v1174, 0.0
    %v1209 = vrot.slane %v84, 1
    %v1210 = vrot.slane %v84, 2
    %v1211 = vrot.slane %v84, 3
    %v1212 = vrot.slane %v84, 4
    %v1213 = vrot.slane %v84, 5
    %v1214 = vrot.slane %v84, 6
    %v1215 = vrot.slane %v84, 7
    %v1216 = vrot.slane %v87, 1
    %v1217 = vrot.slane %v87, 2
    %v1218 = vrot.slane %v87, 3
    %v1219 = vrot.slane %v87, 4
    %v1220 = vrot.slane %v87, 5
    %v1221 = vrot.slane %v87, 6
    %v1222 = vrot.slane %v87, 7
    %v1223 = vsel %vm1175, 1, 0
    %v1224 = vsel %vm1176, 1, 0
    %v1225 = vsel %vm1177, 1, 0
    %v1226 = vsel %vm1178, 1, 0
    %v1227 = vsel %vm1179, 1, 0
    %v1228 = vsel %vm1180, 1, 0
    %v1229 = vsel %vm1181, 1, 0
    %v1230 = vsel %vm1182, 1, 0
    %v1231 = vsel %vm1183, 1, 0
    %v1232 = vsel %vm1184, 1, 0
    %v1233 = vsel %vm1185, 1, 0
    %v1234 = vsel %vm1186, 1, 0
    %v1235 = vsel %vm1187, 1, 0
    %v1236 = vsel %vm1188, 1, 0
    %v1237 = vsel %vm1189, 1, 0
    %v1238 = vsel %vm1190, 1, 0
    %v1239 = vsel %vm1191, 1, 0
    %v1240 = vsel %vm1192, 1, 0
    %v1241 = vsel %vm1193, 1, 0
    %v1242 = vsel %vm1194, 1, 0
    %v1243 = vsel %vm1195, 1, 0
    %v1244 = vsel %vm1196, 1, 0
    %v1245 = vsel %vm1197, 1, 0
    %v1246 = vsel %vm1198, 1, 0
    %v1247 = vsel %vm1199, 1, 0
    %v1248 = vsel %vm1200, 1, 0
    %v1249 = vsel %vm1201, 1, 0
    %v1250 = vsel %vm1202, 1, 0
    %v1251 = vsel %vm1203, 1, 0
    %v1252 = vsel %vm1204, 1, 0
    %v1253 = vsel %vm1205, 1, 0
    %v1254 = vsel %vm1206, 1, 0
    %vm1255 = vcmp.eq.s32.totalorder %v1223, 1
    %vm1256 = vcmp.eq.s32.totalorder %v1224, 1
    %vm1257 = vcmp.eq.s32.totalorder %v1225, 1
    %vm1258 = vcmp.eq.s32.totalorder %v1226, 1
    %vm1259 = vcmp.eq.s32.totalorder %v1227, 1
    %vm1260 = vcmp.eq.s32.totalorder %v1228, 1
    %vm1261 = vcmp.eq.s32.totalorder %v1229, 1
    %vm1262 = vcmp.eq.s32.totalorder %v1230, 1
    %vm1263 = vcmp.eq.s32.totalorder %v1231, 1
    %vm1264 = vcmp.eq.s32.totalorder %v1232, 1
    %vm1265 = vcmp.eq.s32.totalorder %v1233, 1
    %vm1266 = vcmp.eq.s32.totalorder %v1234, 1
    %vm1267 = vcmp.eq.s32.totalorder %v1235, 1
    %vm1268 = vcmp.eq.s32.totalorder %v1236, 1
    %vm1269 = vcmp.eq.s32.totalorder %v1237, 1
    %vm1270 = vcmp.eq.s32.totalorder %v1238, 1
    %vm1271 = vcmp.eq.s32.totalorder %v1239, 1
    %vm1272 = vcmp.eq.s32.totalorder %v1240, 1
    %vm1273 = vcmp.eq.s32.totalorder %v1241, 1
    %vm1274 = vcmp.eq.s32.totalorder %v1242, 1
    %vm1275 = vcmp.eq.s32.totalorder %v1243, 1
    %vm1276 = vcmp.eq.s32.totalorder %v1244, 1
    %vm1277 = vcmp.eq.s32.totalorder %v1245, 1
    %vm1278 = vcmp.eq.s32.totalorder %v1246, 1
    %vm1279 = vcmp.eq.s32.totalorder %v1247, 1
    %vm1280 = vcmp.eq.s32.totalorder %v1248, 1
    %vm1281 = vcmp.eq.s32.totalorder %v1249, 1
    %vm1282 = vcmp.eq.s32.totalorder %v1250, 1
    %vm1283 = vcmp.eq.s32.totalorder %v1251, 1
    %vm1284 = vcmp.eq.s32.totalorder %v1252, 1
    %vm1285 = vcmp.eq.s32.totalorder %v1253, 1
    %vm1286 = vcmp.eq.s32.totalorder %v1254, 1
    %v1287 = vperm.slane %v84, 0
    %v1288 = vperm.slane %v1209, 0
    %v1289 = vperm.slane %v1210, 0
    %v1290 = vperm.slane %v1211, 0
    %v1291 = vperm.slane %v1212, 0
    %v1292 = vperm.slane %v1213, 0
    %v1293 = vperm.slane %v1214, 0
    %v1294 = vperm.slane %v1215, 0
    %v1295 = vperm.slane %v87, 0
    %v1296 = vperm.slane %v1216, 0
    %v1297 = vperm.slane %v1217, 0
    %v1298 = vperm.slane %v1218, 0
    %v1299 = vperm.slane %v1219, 0
    %v1300 = vperm.slane %v1220, 0
    %v1301 = vperm.slane %v1221, 0
    %v1302 = vperm.slane %v1222, 0
    %v1319 = vsel %vm1255, %v1287, -1e+30
    %v1320 = vsel %vm1256, %v1287, -1e+30
    %v1321 = vsel %vm1257, %v1288, -1e+30
    %v1322 = vsel %vm1258, %v1288, -1e+30
    %v1323 = vsel %vm1259, %v1289, -1e+30
    %v1324 = vsel %vm1260, %v1289, -1e+30
    %v1325 = vsel %vm1261, %v1290, -1e+30
    %v1326 = vsel %vm1262, %v1290, -1e+30
    %v1327 = vsel %vm1263, %v1291, -1e+30
    %v1328 = vsel %vm1264, %v1291, -1e+30
    %v1329 = vsel %vm1265, %v1292, -1e+30
    %v1330 = vsel %vm1266, %v1292, -1e+30
    %v1331 = vsel %vm1267, %v1293, -1e+30
    %v1332 = vsel %vm1268, %v1293, -1e+30
    %v1333 = vsel %vm1269, %v1294, -1e+30
    %v1334 = vsel %vm1270, %v1294, -1e+30
    %v1335 = vsel %vm1271, %v1295, -1e+30
    %v1336 = vsel %vm1272, %v1295, -1e+30
    %v1337 = vsel %vm1273, %v1296, -1e+30
    %v1338 = vsel %vm1274, %v1296, -1e+30
    %v1339 = vsel %vm1275, %v1297, -1e+30
    %v1340 = vsel %vm1276, %v1297, -1e+30
    %v1341 = vsel %vm1277, %v1298, -1e+30
    %v1342 = vsel %vm1278, %v1298, -1e+30
    %v1343 = vsel %vm1279, %v1299, -1e+30
    %v1344 = vsel %vm1280, %v1299, -1e+30
    %v1345 = vsel %vm1281, %v1300, -1e+30
    %v1346 = vsel %vm1282, %v1300, -1e+30
    %v1347 = vsel %vm1283, %v1301, -1e+30
    %v1348 = vsel %vm1284, %v1301, -1e+30
    %v1349 = vsel %vm1285, %v1302, -1e+30
    %v1350 = vsel %vm1286, %v1302, -1e+30
    %v1351 = vsel %vm806, %v1319, -inf
    %v1352 = vsel %vm806, %v1321, -inf
    %v1353 = vsel %vm806, %v1323, -inf
    %v1354 = vmax.f32 %v1351, %v1353
    %v1355 = vsel %vm806, %v1325, -inf
    %v1356 = vmax.f32 %v1352, %v1355
    %v1357 = vsel %vm806, %v1327, -inf
    %v1358 = vmax.f32 %v1354, %v1357
    %v1359 = vsel %vm806, %v1329, -inf
    %v1360 = vmax.f32 %v1356, %v1359
    %v1361 = vsel %vm806, %v1331, -inf
    %v1362 = vmax.f32 %v1358, %v1361
    %v1363 = vsel %vm806, %v1333, -inf
    %v1364 = vmax.f32 %v1360, %v1363
    %v1365 = vsel %vm806, %v1335, -inf
    %v1366 = vmax.f32 %v1362, %v1365
    %v1367 = vsel %vm806, %v1337, -inf
    %v1368 = vmax.f32 %v1364, %v1367
    %v1369 = vsel %vm806, %v1339, -inf
    %v1370 = vmax.f32 %v1366, %v1369
    %v1371 = vsel %vm806, %v1341, -inf
    %v1372 = vmax.f32 %v1368, %v1371
    %v1373 = vsel %vm806, %v1343, -inf
    %v1374 = vmax.f32 %v1370, %v1373
    %v1375 = vsel %vm806, %v1345, -inf
    %v1376 = vmax.f32 %v1372, %v1375
    %v1377 = vsel %vm806, %v1347, -inf
    %v1378 = vmax.f32 %v1374, %v1377
    %v1379 = vsel %vm806, %v1349, -inf
    %v1380 = vmax.f32 %v1376, %v1379
    %v1381 = vmax.f32 %v1378, %v1380
    %v1382 = vsel %vm806, %v1320, -inf
    %v1383 = vsel %vm806, %v1322, -inf
    %v1384 = vsel %vm806, %v1324, -inf
    %v1385 = vmax.f32 %v1382, %v1384
    %v1386 = vsel %vm806, %v1326, -inf
    %v1387 = vmax.f32 %v1383, %v1386
    %v1388 = vsel %vm806, %v1328, -inf
    %v1389 = vmax.f32 %v1385, %v1388
    %v1390 = vsel %vm806, %v1330, -inf
    %v1391 = vmax.f32 %v1387, %v1390
    %v1392 = vsel %vm806, %v1332, -inf
    %v1393 = vmax.f32 %v1389, %v1392
    %v1394 = vsel %vm806, %v1334, -inf
    %v1395 = vmax.f32 %v1391, %v1394
    %v1396 = vsel %vm806, %v1336, -inf
    %v1397 = vmax.f32 %v1393, %v1396
    %v1398 = vsel %vm806, %v1338, -inf
    %v1399 = vmax.f32 %v1395, %v1398
    %v1400 = vsel %vm806, %v1340, -inf
    %v1401 = vmax.f32 %v1397, %v1400
    %v1402 = vsel %vm806, %v1342, -inf
    %v1403 = vmax.f32 %v1399, %v1402
    %v1404 = vsel %vm806, %v1344, -inf
    %v1405 = vmax.f32 %v1401, %v1404
    %v1406 = vsel %vm806, %v1346, -inf
    %v1407 = vmax.f32 %v1403, %v1406
    %v1408 = vsel %vm806, %v1348, -inf
    %v1409 = vmax.f32 %v1405, %v1408
    %v1410 = vsel %vm806, %v1350, -inf
    %v1411 = vmax.f32 %v1407, %v1410
    %v1412 = vmax.f32 %v1409, %v1411
    %v1413 = vmax.f32 %v84, %v1381
    %v1414 = vmax.f32 %v87, %v1412
    %v1415 = vsel %vm1255, %v1287, 1e+30
    %v1416 = vsel %vm1256, %v1287, 1e+30
    %v1417 = vsel %vm1257, %v1288, 1e+30
    %v1418 = vsel %vm1258, %v1288, 1e+30
    %v1419 = vsel %vm1259, %v1289, 1e+30
    %v1420 = vsel %vm1260, %v1289, 1e+30
    %v1421 = vsel %vm1261, %v1290, 1e+30
    %v1422 = vsel %vm1262, %v1290, 1e+30
    %v1423 = vsel %vm1263, %v1291, 1e+30
    %v1424 = vsel %vm1264, %v1291, 1e+30
    %v1425 = vsel %vm1265, %v1292, 1e+30
    %v1426 = vsel %vm1266, %v1292, 1e+30
    %v1427 = vsel %vm1267, %v1293, 1e+30
    %v1428 = vsel %vm1268, %v1293, 1e+30
    %v1429 = vsel %vm1269, %v1294, 1e+30
    %v1430 = vsel %vm1270, %v1294, 1e+30
    %v1431 = vsel %vm1271, %v1295, 1e+30
    %v1432 = vsel %vm1272, %v1295, 1e+30
    %v1433 = vsel %vm1273, %v1296, 1e+30
    %v1434 = vsel %vm1274, %v1296, 1e+30
    %v1435 = vsel %vm1275, %v1297, 1e+30
    %v1436 = vsel %vm1276, %v1297, 1e+30
    %v1437 = vsel %vm1277, %v1298, 1e+30
    %v1438 = vsel %vm1278, %v1298, 1e+30
    %v1439 = vsel %vm1279, %v1299, 1e+30
    %v1440 = vsel %vm1280, %v1299, 1e+30
    %v1441 = vsel %vm1281, %v1300, 1e+30
    %v1442 = vsel %vm1282, %v1300, 1e+30
    %v1443 = vsel %vm1283, %v1301, 1e+30
    %v1444 = vsel %vm1284, %v1301, 1e+30
    %v1445 = vsel %vm1285, %v1302, 1e+30
    %v1446 = vsel %vm1286, %v1302, 1e+30
    %v1447 = vsel %vm806, %v1415, inf
    %v1448 = vsel %vm806, %v1417, inf
    %v1449 = vsel %vm806, %v1419, inf
    %v1450 = vmin.f32 %v1447, %v1449
    %v1451 = vsel %vm806, %v1421, inf
    %v1452 = vmin.f32 %v1448, %v1451
    %v1453 = vsel %vm806, %v1423, inf
    %v1454 = vmin.f32 %v1450, %v1453
    %v1455 = vsel %vm806, %v1425, inf
    %v1456 = vmin.f32 %v1452, %v1455
    %v1457 = vsel %vm806, %v1427, inf
    %v1458 = vmin.f32 %v1454, %v1457
    %v1459 = vsel %vm806, %v1429, inf
    %v1460 = vmin.f32 %v1456, %v1459
    %v1461 = vsel %vm806, %v1431, inf
    %v1462 = vmin.f32 %v1458, %v1461
    %v1463 = vsel %vm806, %v1433, inf
    %v1464 = vmin.f32 %v1460, %v1463
    %v1465 = vsel %vm806, %v1435, inf
    %v1466 = vmin.f32 %v1462, %v1465
    %v1467 = vsel %vm806, %v1437, inf
    %v1468 = vmin.f32 %v1464, %v1467
    %v1469 = vsel %vm806, %v1439, inf
    %v1470 = vmin.f32 %v1466, %v1469
    %v1471 = vsel %vm806, %v1441, inf
    %v1472 = vmin.f32 %v1468, %v1471
    %v1473 = vsel %vm806, %v1443, inf
    %v1474 = vmin.f32 %v1470, %v1473
    %v1475 = vsel %vm806, %v1445, inf
    %v1476 = vmin.f32 %v1472, %v1475
    %v1477 = vmin.f32 %v1474, %v1476
    %v1478 = vsel %vm806, %v1416, inf
    %v1479 = vsel %vm806, %v1418, inf
    %v1480 = vsel %vm806, %v1420, inf
    %v1481 = vmin.f32 %v1478, %v1480
    %v1482 = vsel %vm806, %v1422, inf
    %v1483 = vmin.f32 %v1479, %v1482
    %v1484 = vsel %vm806, %v1424, inf
    %v1485 = vmin.f32 %v1481, %v1484
    %v1486 = vsel %vm806, %v1426, inf
    %v1487 = vmin.f32 %v1483, %v1486
    %v1488 = vsel %vm806, %v1428, inf
    %v1489 = vmin.f32 %v1485, %v1488
    %v1490 = vsel %vm806, %v1430, inf
    %v1491 = vmin.f32 %v1487, %v1490
    %v1492 = vsel %vm806, %v1432, inf
    %v1493 = vmin.f32 %v1489, %v1492
    %v1494 = vsel %vm806, %v1434, inf
    %v1495 = vmin.f32 %v1491, %v1494
    %v1496 = vsel %vm806, %v1436, inf
    %v1497 = vmin.f32 %v1493, %v1496
    %v1498 = vsel %vm806, %v1438, inf
    %v1499 = vmin.f32 %v1495, %v1498
    %v1500 = vsel %vm806, %v1440, inf
    %v1501 = vmin.f32 %v1497, %v1500
    %v1502 = vsel %vm806, %v1442, inf
    %v1503 = vmin.f32 %v1499, %v1502
    %v1504 = vsel %vm806, %v1444, inf
    %v1505 = vmin.f32 %v1501, %v1504
    %v1506 = vsel %vm806, %v1446, inf
    %v1507 = vmin.f32 %v1503, %v1506
    %v1508 = vmin.f32 %v1505, %v1507
    %v1509 = vmin.f32 %v84, %v1477
    %v1510 = vmin.f32 %v87, %v1508
    %1515 = vrot.lane.b32.xlu0 %v869, 32
    %v1516 = vpop.permute.xlu0 %1515
    %1517 = vrot.lane.b32.xlu0 %v870, 32
    %v1518 = vpop.permute.xlu0 %1517
    %1519 = vrot.lane.b32.xlu0 %v1413, 32
    %v1520 = vpop.permute.xlu0 %1519
    %1521 = vrot.lane.b32.xlu0 %v1414, 32
    %v1522 = vpop.permute.xlu0 %1521
    %1531 = vrot.lane.b32.xlu0 %v965, 64
    %v1532 = vpop.permute.xlu0 %1531
    %1533 = vrot.lane.b32.xlu0 %v966, 64
    %v1534 = vpop.permute.xlu0 %1533
    %1535 = vrot.lane.b32.xlu0 %v1509, 64
    %v1536 = vpop.permute.xlu0 %1535
    %1537 = vrot.lane.b32.xlu0 %v1510, 64
    %v1538 = vpop.permute.xlu0 %1537
    %1547 = vrot.lane.b32.xlu0 %v385, 96
    %v1548 = vpop.permute.xlu0 %1547
    %1549 = vrot.lane.b32.xlu0 %v397, 96
    %v1550 = vpop.permute.xlu0 %1549
    %1551 = vrot.lane.b32.xlu0 %v409, 96
    %v1552 = vpop.permute.xlu0 %1551
    %1553 = vrot.lane.b32.xlu0 %v421, 96
    %v1554 = vpop.permute.xlu0 %1553
    %v1559 = vsel %vm806, %v350, %v1516
    %v1560 = vsel %vm806, %v351, %v1518
    %v1561 = vsel %vm806, %v352, %v1520
    %v1562 = vsel %vm806, %v353, %v1522
    %vm1563 = vcmask 523264
    %v1564 = vsel %vm1563, %v1559, %v1532
    %v1565 = vsel %vm1563, %v1560, %v1534
    %v1566 = vsel %vm1563, %v1561, %v1536
    %v1567 = vsel %vm1563, %v1562, %v1538
    %vm1568 = vcmask 785408
    %v1569 = vsel %vm1568, %v1564, %v1548
    %v1570 = vsel %vm1568, %v1565, %v1550
    %v1571 = vsel %vm1568, %v1566, %v1552
    %v1572 = vsel %vm1568, %v1567, %v1554
    %v1573 = vadd.f32 %v182, 1.0
    %v1574 = vadd.f32 %v183, 1.0
    %v1575 = vadd.f32 %v184, 1.0
    %v1576 = vadd.f32 %v185, 1.0
    %v1577 = vlog2.pop %v1573
    %v1578 = vmul.f32 %v1577, 0.6931472
    %v1579 = vlog2.pop %v1574
    %v1580 = vmul.f32 %v1579, 0.6931472
    %v1581 = vlog2.pop %v1575
    %v1582 = vmul.f32 %v1581, 0.6931472
    %v1583 = vlog2.pop %v1576
    %v1584 = vmul.f32 %v1583, 0.6931472
    %v1585 = vrcp.pop %v1578
    %v1586 = vmul.f32 %v1578, %v1585
    %v1587 = vsub.f32 1.0, %v1586
    %v1588 = vmul.f32 %v1585, %v1587
    %v1589 = vadd.f32 %v1585, %v1588
    %vm1590 = vweird.f32 %v1578
    %vm1591 = vweird.f32 %v1585
    %vm1592 = vmor %vm1590, %vm1591
    %v1593 = vsel %vm1592, %v1585, %v1589
    %v1594 = vand.u32 2147483647, %v1578
    %vm1595 = vcmp.eq.f32.partialorder %v1594, 8.507059e+37
    %v1596 = vand.u32 %v1578, 2147483648
    %v1597 = vor.u32 1.1754944e-38, %v1596
    %v1598 = vsel %vm1595, %v1597, %v1593
    %v1599 = vrcp.pop %v1580
    %v1600 = vmul.f32 %v1580, %v1599
    %v1601 = vsub.f32 1.0, %v1600
    %v1602 = vmul.f32 %v1599, %v1601
    %v1603 = vadd.f32 %v1599, %v1602
    %vm1604 = vweird.f32 %v1580
    %vm1605 = vweird.f32 %v1599
    %vm1606 = vmor %vm1604, %vm1605
    %v1607 = vsel %vm1606, %v1599, %v1603
    %v1608 = vand.u32 2147483647, %v1580
    %vm1609 = vcmp.eq.f32.partialorder %v1608, 8.507059e+37
    %v1610 = vand.u32 %v1580, 2147483648
    %v1611 = vor.u32 1.1754944e-38, %v1610
    %v1612 = vsel %vm1609, %v1611, %v1607
    %v1613 = vrcp.pop %v1582
    %v1614 = vmul.f32 %v1582, %v1613
    %v1615 = vsub.f32 1.0, %v1614
    %v1616 = vmul.f32 %v1613, %v1615
    %v1617 = vadd.f32 %v1613, %v1616
    %vm1618 = vweird.f32 %v1582
    %vm1619 = vweird.f32 %v1613
    %vm1620 = vmor %vm1618, %vm1619
    %v1621 = vsel %vm1620, %v1613, %v1617
    %v1622 = vand.u32 2147483647, %v1582
    %vm1623 = vcmp.eq.f32.partialorder %v1622, 8.507059e+37
    %v1624 = vand.u32 %v1582, 2147483648
    %v1625 = vor.u32 1.1754944e-38, %v1624
    %v1626 = vsel %vm1623, %v1625, %v1621
    %v1627 = vrcp.pop %v1584
    %v1628 = vmul.f32 %v1584, %v1627
    %v1629 = vsub.f32 1.0, %v1628
    %v1630 = vmul.f32 %v1627, %v1629
    %v1631 = vadd.f32 %v1627, %v1630
    %vm1632 = vweird.f32 %v1584
    %vm1633 = vweird.f32 %v1627
    %vm1634 = vmor %vm1632, %vm1633
    %v1635 = vsel %vm1634, %v1627, %v1631
    %v1636 = vand.u32 2147483647, %v1584
    %vm1637 = vcmp.eq.f32.partialorder %v1636, 8.507059e+37
    %v1638 = vand.u32 %v1584, 2147483648
    %v1639 = vor.u32 1.1754944e-38, %v1638
    %v1640 = vsel %vm1637, %v1639, %v1635
    %v1641 = vld [vmem:[%s4] sm:$0xff]
    %v1642 = vld [vmem:[%s4 + $0x8] sm:$0xff]
    %v1643 = vld [vmem:[%s4 + $0x10] sm:$0xff]
    %v1644 = vld [vmem:[%s4 + $0x18] sm:$0xff]
    %v1645 = vld [vmem:[%s4 + $0x20] sm:$0xff]
    %v1646 = vld [vmem:[%s4 + $0x28] sm:$0xff]
    %v1647 = vld [vmem:[%s4 + $0x30] sm:$0xff]
    %v1648 = vld [vmem:[%s4 + $0x38] sm:$0xff]
    %v1649 = vld [vmem:[%s4 + $0x40] sm:$0xff]
    %v1650 = vld [vmem:[%s4 + $0x48] sm:$0xff]
    %v1651 = vld [vmem:[%s4 + $0x50] sm:$0xff]
    %v1652 = vld [vmem:[%s4 + $0x58] sm:$0xff]
    %v1653 = vld [vmem:[%s4 + $0x60] sm:$0xff]
    %v1654 = vld [vmem:[%s4 + $0x68] sm:$0xff]
    %v1655 = vld [vmem:[%s4 + $0x70] sm:$0xff]
    %v1656 = vld [vmem:[%s4 + $0x78] sm:$0xff]
    %v1657 = vld [vmem:[%s5] sm:$0xff]
    %v1658 = vld [vmem:[%s5 + $0x8] sm:$0xff]
    %v1659 = vld [vmem:[%s5 + $0x10] sm:$0xff]
    %v1660 = vld [vmem:[%s5 + $0x18] sm:$0xff]
    %v1661 = vld [vmem:[%s5 + $0x20] sm:$0xff]
    %v1662 = vld [vmem:[%s5 + $0x28] sm:$0xff]
    %v1663 = vld [vmem:[%s5 + $0x30] sm:$0xff]
    %v1664 = vld [vmem:[%s5 + $0x38] sm:$0xff]
    %v1665 = vld [vmem:[%s5 + $0x40] sm:$0xff]
    %v1666 = vld [vmem:[%s5 + $0x48] sm:$0xff]
    %v1667 = vld [vmem:[%s5 + $0x50] sm:$0xff]
    %v1668 = vld [vmem:[%s5 + $0x58] sm:$0xff]
    %v1669 = vld [vmem:[%s5 + $0x60] sm:$0xff]
    %v1670 = vld [vmem:[%s5 + $0x68] sm:$0xff]
    %v1671 = vld [vmem:[%s5 + $0x70] sm:$0xff]
    %v1672 = vld [vmem:[%s5 + $0x78] sm:$0xff]
    %1673 = vmatpush.msra.mxu0 %v1672
    %1674 = vmatpush.msra.mxu0 %v1671
    %1675 = vmatpush.msra.mxu0 %v1670
    %1676 = vmatpush.msra.mxu0 %v1669
    %1677 = vmatpush.msra.mxu0 %v1668
    %1678 = vmatpush.msra.mxu0 %v1667
    %1679 = vmatpush.msra.mxu0 %v1666
    %1680 = vmatpush.msra.mxu0 %v1665
    %1681 = vmatpush.msra.mxu0 %v1664
    %1682 = vmatpush.msra.mxu0 %v1663
    %1683 = vmatpush.msra.mxu0 %v1662
    %1684 = vmatpush.msra.mxu0 %v1661
    %1685 = vmatpush.msra.mxu0 %v1660
    %1686 = vmatpush.msra.mxu0 %v1659
    %1687 = vmatpush.msra.mxu0 %v1658
    %1688 = vmatpush.msra.mxu0 %v1657
    %1689 = vmatmul.f32.gmra.mxu0 %v1569
    %v1690 = vpop.f32.mrf.mxu0
    %v1691 = vadd.f32 0.0, %v1690
    %1692 = vmatmul.f32.gmra.mxu0 %v1570
    %v1693 = vpop.f32.mrf.mxu0
    %v1694 = vadd.f32 0.0, %v1693
    %1695 = vmatmul.f32.gmra.mxu0 %v1571
    %v1696 = vpop.f32.mrf.mxu0
    %v1697 = vadd.f32 0.0, %v1696
    %1698 = vmatmul.f32.gmra.mxu0 %v1572
    %v1699 = vpop.f32.mrf.mxu0
    %v1700 = vadd.f32 0.0, %v1699
    %1701 = vdwg.mxu0
    %v1702 = vmul.f32 %v1578, %v1691
    %v1703 = vmul.f32 %v1580, %v1694
    %v1704 = vmul.f32 %v1582, %v1697
    %v1705 = vmul.f32 %v1584, %v1700
    %1706 = vmatpush.msra.mxu0 %v1656
    %1707 = vmatpush.msra.mxu0 %v1655
    %1708 = vmatpush.msra.mxu0 %v1654
    %1709 = vmatpush.msra.mxu0 %v1653
    %1710 = vmatpush.msra.mxu0 %v1652
    %1711 = vmatpush.msra.mxu0 %v1651
    %1712 = vmatpush.msra.mxu0 %v1650
    %1713 = vmatpush.msra.mxu0 %v1649
    %1714 = vmatpush.msra.mxu0 %v1648
    %1715 = vmatpush.msra.mxu0 %v1647
    %1716 = vmatpush.msra.mxu0 %v1646
    %1717 = vmatpush.msra.mxu0 %v1645
    %1718 = vmatpush.msra.mxu0 %v1644
    %1719 = vmatpush.msra.mxu0 %v1643
    %1720 = vmatpush.msra.mxu0 %v1642
    %1721 = vmatpush.msra.mxu0 %v1641
    %1722 = vmatmul.f32.gmra.mxu0 %v1569
    %v1723 = vpop.f32.mrf.mxu0
    %v1724 = vadd.f32 %v1702, %v1723
    %1725 = vmatmul.f32.gmra.mxu0 %v1570
    %v1726 = vpop.f32.mrf.mxu0
    %v1727 = vadd.f32 %v1703, %v1726
    %1728 = vmatmul.f32.gmra.mxu0 %v1571
    %v1729 = vpop.f32.mrf.mxu0
    %v1730 = vadd.f32 %v1704, %v1729
    %1731 = vmatmul.f32.gmra.mxu0 %v1572
    %v1732 = vpop.f32.mrf.mxu0
    %v1733 = vadd.f32 %v1705, %v1732
    %1734 = vdwg.mxu0
    %v1735 = vld [vmem:[%s6] sm:$0xff]
    %v1736 = vld [vmem:[%s6 + $0x8] sm:$0xff]
    %v1737 = vld [vmem:[%s6 + $0x10] sm:$0xff]
    %v1738 = vld [vmem:[%s6 + $0x18] sm:$0xff]
    %v1739 = vld [vmem:[%s6 + $0x20] sm:$0xff]
    %v1740 = vld [vmem:[%s6 + $0x28] sm:$0xff]
    %v1741 = vld [vmem:[%s6 + $0x30] sm:$0xff]
    %v1742 = vld [vmem:[%s6 + $0x38] sm:$0xff]
    %v1743 = vld [vmem:[%s6 + $0x40] sm:$0xff]
    %v1744 = vld [vmem:[%s6 + $0x48] sm:$0xff]
    %v1745 = vld [vmem:[%s6 + $0x50] sm:$0xff]
    %v1746 = vld [vmem:[%s6 + $0x58] sm:$0xff]
    %v1747 = vld [vmem:[%s6 + $0x60] sm:$0xff]
    %v1748 = vld [vmem:[%s6 + $0x68] sm:$0xff]
    %v1749 = vld [vmem:[%s6 + $0x70] sm:$0xff]
    %v1750 = vld [vmem:[%s6 + $0x78] sm:$0xff]
    %1751 = vmatpush.msra.mxu0 %v1750
    %1752 = vmatpush.msra.mxu0 %v1749
    %1753 = vmatpush.msra.mxu0 %v1748
    %1754 = vmatpush.msra.mxu0 %v1747
    %1755 = vmatpush.msra.mxu0 %v1746
    %1756 = vmatpush.msra.mxu0 %v1745
    %1757 = vmatpush.msra.mxu0 %v1744
    %1758 = vmatpush.msra.mxu0 %v1743
    %1759 = vmatpush.msra.mxu0 %v1742
    %1760 = vmatpush.msra.mxu0 %v1741
    %1761 = vmatpush.msra.mxu0 %v1740
    %1762 = vmatpush.msra.mxu0 %v1739
    %1763 = vmatpush.msra.mxu0 %v1738
    %1764 = vmatpush.msra.mxu0 %v1737
    %1765 = vmatpush.msra.mxu0 %v1736
    %1766 = vmatpush.msra.mxu0 %v1735
    %1767 = vmatmul.f32.gmra.mxu0 %v1569
    %v1768 = vpop.f32.mrf.mxu0
    %v1769 = vadd.f32 0.0, %v1768
    %1770 = vmatmul.f32.gmra.mxu0 %v1570
    %v1771 = vpop.f32.mrf.mxu0
    %v1772 = vadd.f32 0.0, %v1771
    %1773 = vmatmul.f32.gmra.mxu0 %v1571
    %v1774 = vpop.f32.mrf.mxu0
    %v1775 = vadd.f32 0.0, %v1774
    %1776 = vmatmul.f32.gmra.mxu0 %v1572
    %v1777 = vpop.f32.mrf.mxu0
    %v1778 = vadd.f32 0.0, %v1777
    %1779 = vdwg.mxu0
    %v1780 = vmul.f32 %v1598, %v1769
    %v1781 = vmul.f32 %v1612, %v1772
    %v1782 = vmul.f32 %v1626, %v1775
    %v1783 = vmul.f32 %v1640, %v1778
    %v1784 = vadd.f32 %v1724, %v1780
    %v1785 = vadd.f32 %v1727, %v1781
    %v1786 = vadd.f32 %v1730, %v1782
    %v1787 = vadd.f32 %v1733, %v1783
    %v1788 = vld [vmem:[%s7] sm:$0x1]
    %v1790 = vperm.slane %v1788, 0
    %v1792 = vadd.f32 %v1784, %v1790
    %v1793 = vadd.f32 %v1785, %v1790
    %v1794 = vadd.f32 %v1786, %v1790
    %v1795 = vadd.f32 %v1787, %v1790
    %v1796 = vld [vmem:[%s8] sm:$0x1]
    %v1798 = vperm.slane %v1796, 0
    %v1800 = vmul.f32 %v1792, %v1798
    %v1801 = vmul.f32 %v1793, %v1798
    %v1802 = vmul.f32 %v1794, %v1798
    %v1803 = vmul.f32 %v1795, %v1798
    %v1804 = vsel %vm806, %v1800, 0.0
    %1805 = vadd.xlane.f32.xlu0 %v1804
    %v1806 = vpop.xlane.xlu0 %1805
    %v1807 = vsel %vm806, %v1801, 0.0
    %1808 = vadd.xlane.f32.xlu0 %v1807
    %v1809 = vpop.xlane.xlu0 %1808
    %v1810 = vsel %vm806, %v1802, 0.0
    %1811 = vadd.xlane.f32.xlu0 %v1810
    %v1812 = vpop.xlane.xlu0 %1811
    %v1813 = vsel %vm806, %v1803, 0.0
    %1814 = vadd.xlane.f32.xlu0 %v1813
    %v1815 = vpop.xlane.xlu0 %1814
    %v1816 = vld [vmem:[#allocation2] sm:$0x1]
    %v1818 = vperm.slane %v1816, 0
    %1819 = vset.pattern.permute.xlu0 0
    %1820 = vperm.xlu0 %1819, %v1818
    %v1821 = vpop.permute.xlu0 %1820
    %v1823 = vadd.f32 %v1806, %v1821
    %v1824 = vadd.f32 %v1809, %v1821
    %v1825 = vadd.f32 %v1812, %v1821
    %v1826 = vadd.f32 %v1815, %v1821
    %v1831 = vlaneseq
    %v1832 = vand.u32 %v1831, 127
    %v1833 = vperm.slane %v1823, %v1832
    %v1834 = vadd.s32 %v1832, 4294967288
    %v1835 = vperm.slane %v1824, %v1834
    %vm1836 = vcmask 130112
    %v1837 = vsel %vm1836, %v1835, %v1833
    %v1838 = vperm.slane %v1825, %v1832
    %v1839 = vperm.slane %v1826, %v1834
    %v1840 = vsel %vm1836, %v1839, %v1838
    %vm1841 = vcmask 1041409
    %v1842 = vsel %vm1841, %v1840, %v1837
    %vm1844 = vcmask 123904
    %1845 = vst.msk [vmem:[#allocation3] sm:$0x3] %vm1844, %v1842
    // Predicated region
    $region42: #{tpu_custom_call.1} parent=1 // pred_check
      _
    $region43: #{tpu_custom_call.1} parent=1 // pred_check_branch
      %1847 = sbr.rel (0) target = $region45
    $region44: #{tpu_custom_call.1} parent=1 // pred_region
      %1849 = vsyncadd [#allocation4], 0
      %s1851 = sshll.u32 [#allocation3], 4
      %s1852 = int_to_ptr.vmem [resolvable:$true] %s1851
      %s1853 = sshll.u32 %s10, 4
      %s1854 = int_to_ptr.hbm [resolvable:$true] %s1853
      %1856 = dma.vmem_to_hbm [thread:$0]  %s1852, 32, %s1854, [#allocation4]
    $region45: #{tpu_custom_call.1} parent=1 // pred_fallthru
      _
    // Predicated region
    $region46: #{tpu_custom_call.1} parent=1 // pred_check
      _
    $region47: #{tpu_custom_call.1} parent=1 // pred_check_branch
      %1858 = sbr.rel (0) target = $region49
    $region48: #{tpu_custom_call.1} parent=1 // pred_region
      %1860 = dma.done [#allocation4], 32
    $region49: #{tpu_custom_call.1} parent=1 // pred_fallthru
      _
    %1861 = vsyncpa [#allocation4], 1

</llo_original>
